<compile_context>
chip_gen: v5e
topology: v5e:2x2
jax: 0.10.0
libtpu: 0.0.40
codegen_flags: <defaults>
</compile_context>

<pallas_src>
import functools

import jax
import jax.numpy as jnp
from jax.experimental import pallas as pl
from jax.experimental.pallas import tpu as pltpu

HIDDEN = 300          # fixed by the module definition
_NEG_BIG = -1e30      # padded-logit bias -> exp underflows to exactly 0 in f32


def _round_up(x, m):
    return (x + m - 1) // m * m


def _cdiv(a, b):
    return -(-a // b)


@functools.lru_cache(maxsize=None)
def _vmem_info():
    """Return (tiling budget bytes, vmem_limit ceiling bytes), generation-aware."""
    try:
        cap = int(pltpu.get_tpu_info().vmem_capacity_bytes)
    except Exception:
        cap = 128 << 20
    if cap <= (64 << 20):          # v7x-class: 64 MiB, 2 TCs share the part
        return 22 << 20, 48 << 20
    return 56 << 20, 96 << 20      # v5e / v6e: 128 MiB physical


# ----------------------------------------------------------------------------- kernel


def ml1_probe_kernel(x_ref, w1_ref, b1_ref, w2_ref, b2_ref, o_ref, acc_ref):
    """Grid = (batch tiles [parallel], K tiles [arbitrary])."""
    k = pl.program_id(1)

    @pl.when(k == 0)
    def _():
        acc_ref[...] = jnp.zeros_like(acc_ref)

    # Layer-1 partial matmul on the MXU, f32 accumulation across K tiles.
    acc_ref[...] += jnp.dot(x_ref[...], w1_ref[...],
                            preferred_element_type=jnp.float32)

    @pl.when(k == pl.num_programs(1) - 1)
    def _():
        h = jnp.maximum(acc_ref[...] + b1_ref[...], 0.0)          # bias + ReLU (VPU)
        logits = jnp.dot(h.astype(w2_ref.dtype), w2_ref[...],
                         preferred_element_type=jnp.float32) + b2_ref[...]
        # Numerically stable softmax over the lane-dense padded last axis.
        m = jnp.max(logits, axis=-1, keepdims=True)
        e = jnp.exp(logits - m)
        denom = jnp.sum(e, axis=-1, keepdims=True)
        o_ref[...] = (e * pl.reciprocal(denom, approx=False)).astype(o_ref.dtype)


# ----------------------------------------------------------------------------- packing / tiling


def pack_params(w1, b1, w2, b2, *, compute_dtype=jnp.bfloat16):
    """Pad + cast parameters ONCE (outside the per-call path).

    w1: [E, 300], b1: [1, 300] (or [300]), w2: [300, out_dim], b2: [1, out_dim].
    Returns (w1_p, b1_p, w2_p, b2_p) with lane dims padded to multiples of 128.
    """
    E, H = w1.shape
    out_dim = w2.shape[1]
    h_pad = _round_up(H, 128)
    out_pad = max(_round_up(out_dim, 128), 128)

    w1_p = jnp.pad(w1, ((0, 0), (0, h_pad - H))).astype(compute_dtype)
    b1_p = jnp.pad(jnp.reshape(b1, (1, -1)), ((0, 0), (0, h_pad - H))).astype(jnp.float32)
    w2_p = jnp.pad(w2, ((0, h_pad - H), (0, out_pad - out_dim))).astype(compute_dtype)
    # Keep biases f32 (a -1e30 cast to bf16 would become -inf -> potential NaN).
    b2_p = jnp.pad(jnp.reshape(b2, (1, -1)), ((0, 0), (0, out_pad - out_dim)),
                   constant_values=_NEG_BIG).astype(jnp.float32)
    return w1_p, b1_p, w2_p, b2_p


def _choose_tiling(B, E, h_pad, out_pad, in_bytes, out_bytes, budget,
                   max_tile_b, k_tile_override):
    # --- K (embedding) tiling: only when W1 would eat > 1/4 of the budget ------
    tk = E
    if k_tile_override is not None and 0 < k_tile_override < E and E % k_tile_override == 0:
        tk = k_tile_override
    elif E * h_pad * in_bytes > budget // 4:
        for cand in (512, 384, 256, 128):
            if E % cand == 0:
                tk = cand
                break
        # TODO(synk): pad E when it is large but not a multiple of 128 so the
        # K-tiled path can still be taken instead of keeping all of W1 resident.
    nk = E // tk

    def est(tb):
        w1_buf = (1 if nk == 1 else 2) * tk * h_pad * in_bytes    # resident vs streamed
        w2_buf = h_pad * out_pad * in_bytes + (h_pad + out_pad) * 4
        x_buf = 2 * tb * tk * in_bytes                            # double-buffered X tiles
        o_buf = 2 * tb * out_pad * out_bytes                      # double-buffered out tiles
        scr = tb * h_pad * 4                                      # f32 accumulator scratch
        live = tb * (h_pad + 2 * out_pad) * 4                     # h / logits / exp temporaries
        return w1_buf + w2_buf + x_buf + o_buf + scr + live

    # --- batch tiling: near-divisor tiles (pad < 8 rows/tile), >=2 tiles when
    #     B allows so both v7x TensorCores get work ------------------------------
    tb_cap = min(max_tile_b, _round_up(max(B, 1), 8))
    while tb_cap > 8 and est(tb_cap) > budget:
        tb_cap = _round_up(tb_cap // 2, 8)
    min_tiles = 2 if B > 8 else 1
    n_tiles = max(_cdiv(B, tb_cap), min_tiles)
    tb = _round_up(_cdiv(B, n_tiles), 8)
    n_tiles = _cdiv(B, tb)
    return tb, n_tiles, tk, nk, est(tb)


# ----------------------------------------------------------------------------- forward


@functools.partial(
    jax.jit,
    static_argnames=("out_dim", "weight_buffers", "k_tile_override", "max_tile_b"))
def _forward_impl(x, w1_p, b1_p, w2_p, b2_p, *, out_dim, weight_buffers=1,
                  k_tile_override=None, max_tile_b=1024):
    B, E = x.shape
    h_pad = w1_p.shape[1]
    out_pad = w2_p.shape[1]
    compute_dtype = w1_p.dtype
    out_store_dtype = compute_dtype          # bf16 store halves writeback on bf16 path
    in_bytes = jnp.dtype(compute_dtype).itemsize
    out_bytes = jnp.dtype(out_store_dtype).itemsize

    budget, limit_cap = _vmem_info()
    tb, n_tiles, tk, nk, est_bytes = _choose_tiling(
        B, E, h_pad, out_pad, in_bytes, out_bytes, budget, max_tile_b,
        k_tile_override)
    b_pad = n_tiles * tb

    # Per-call activation prep only (parameters are pre-packed outside this fn).
    x_p = jnp.pad(x, ((0, b_pad - B), (0, 0))).astype(compute_dtype)

    def _resident_spec(shape):
        # Constant index_map -> VMEM-resident; drop the wasted second buffer.
        if weight_buffers is None:
            return pl.BlockSpec(shape, lambda i, k: (0, 0))
        return pl.BlockSpec(shape, lambda i, k: (0, 0),
                            pipeline_mode=pl.Buffered(weight_buffers))

    if nk == 1:
        w1_spec = _resident_spec((tk, h_pad))
    else:
        w1_spec = pl.BlockSpec((tk, h_pad), lambda i, k: (k, 0))   # streamed over K

    cost = pl.CostEstimate(
        flops=2 * b_pad * E * h_pad + 2 * b_pad * h_pad * out_pad,
        transcendentals=b_pad * out_pad,
        bytes_accessed=(b_pad * E * in_bytes + E * h_pad * in_bytes
                        + h_pad * out_pad * in_bytes
                        + (h_pad + out_pad) * 4 + b_pad * out_pad * out_bytes),
    )

    vmem_limit = int(min(max(est_bytes + (16 << 20), 32 << 20), limit_cap))

    out = pl.pallas_call(
        ml1_probe_kernel,
        out_shape=jax.ShapeDtypeStruct((b_pad, out_pad), out_store_dtype),
        grid_spec=pltpu.PrefetchScalarGridSpec(
            num_scalar_prefetch=0,
            grid=(n_tiles, nk),
            in_specs=[
                pl.BlockSpec((tb, tk), lambda i, k: (i, k)),       # X: streamed
                w1_spec,                                           # W1: resident or streamed
                _resident_spec((1, h_pad)),                        # b1
                _resident_spec((h_pad, out_pad)),                  # W2
                _resident_spec((1, out_pad)),                      # b2
            ],
            out_specs=pl.BlockSpec((tb, out_pad), lambda i, k: (i, 0)),
            scratch_shapes=[pltpu.VMEM((tb, h_pad), jnp.float32)],
        ),
        compiler_params=pltpu.CompilerParams(
            dimension_semantics=("parallel", "arbitrary"),
            vmem_limit_bytes=vmem_limit,
        ),
        cost_estimate=cost,
    )(x_p, w1_p, b1_p, w2_p, b2_p)

    return out[:B, :out_dim].astype(jnp.float32)


def ml1_probe_forward(x, w1_p, b1_p, w2_p, b2_p, *, out_dim,
                      k_tile_override=None, max_tile_b=1024):
    """x: [B, E]; packed params from pack_params. Returns f32 probs [B, out_dim]."""
    try:
        return _forward_impl(x, w1_p, b1_p, w2_p, b2_p, out_dim=out_dim,
                             weight_buffers=1, k_tile_override=k_tile_override,
                             max_tile_b=max_tile_b)
    except Exception:
        # Some JAX/Mosaic versions may reject pl.Buffered(1); fall back to the
        # default double-buffered resident weights (same math, a bit more VMEM).
        return _forward_impl(x, w1_p, b1_p, w2_p, b2_p, out_dim=out_dim,
                             weight_buffers=None, k_tile_override=k_tile_override,
                             max_tile_b=max_tile_b)


# ----------------------------------------------------------------------------- reference / demo


def init_params(key, embedding_dim, out_dim):
    """Deterministic init mimicking nn.Linear's uniform(-1/sqrt(fan_in), 1/sqrt(fan_in))."""
    k1, k2, k3, k4 = jax.random.split(key, 4)
    lim1 = 1.0 / jnp.sqrt(embedding_dim)
    lim2 = 1.0 / jnp.sqrt(HIDDEN)
    w1 = jax.random.uniform(k1, (embedding_dim, HIDDEN), jnp.float32, -lim1, lim1)
    b1 = jax.random.uniform(k2, (1, HIDDEN), jnp.float32, -lim1, lim1)
    w2 = jax.random.uniform(k3, (HIDDEN, out_dim), jnp.float32, -lim2, lim2)
    b2 = jax.random.uniform(k4, (1, out_dim), jnp.float32, -lim2, lim2)
    return w1, b1, w2, b2


def reference_forward(x, w1, b1, w2, b2):
    h = jnp.maximum(x @ w1 + b1, 0.0)
    return jax.nn.softmax(h @ w2 + b2, axis=-1)


if __name__ == "__main__":
    key = jax.random.PRNGKey(0)
    kx1, kp1, kx2, kp2 = jax.random.split(key, 4)

    # ---- test 1: small shapes; f32 (bit-tight) and bf16 (default) paths -------
    batch, embedding_dim, out_dim = 16, 32, 10
    x = jax.random.normal(kx1, (batch, embedding_dim), jnp.float32)
    w1, b1, w2, b2 = init_params(kp1, embedding_dim, out_dim)
    ref = reference_forward(x, w1, b1, w2, b2)

    packed_f32 = pack_params(w1, b1, w2, b2, compute_dtype=jnp.float32)
    out_f32 = jax.block_until_ready(
        ml1_probe_forward(x, *packed_f32, out_dim=out_dim))
    assert out_f32.shape == (batch, out_dim)
    assert jnp.allclose(out_f32, ref, atol=1e-5, rtol=1e-5), "f32 path mismatch"
    assert jnp.allclose(jnp.sum(out_f32, axis=-1), 1.0, atol=1e-5)

    packed_bf16 = pack_params(w1, b1, w2, b2)           # bf16 MXU feed (default)
    out_bf16 = jax.block_until_ready(
        ml1_probe_forward(x, *packed_bf16, out_dim=out_dim))
    assert out_bf16.shape == (batch, out_dim)
    assert jnp.allclose(out_bf16, ref, atol=2e-2, rtol=2e-2), "bf16 path drifted"

    # ---- test 2: larger embedding dim, forced K(E)-tiling path ----------------
    batch2, embedding_dim2 = 16, 256
    x2 = jax.random.normal(kx2, (batch2, embedding_dim2), jnp.float32)
    w1b, b1b, w2b, b2b = init_params(kp2, embedding_dim2, out_dim)
    ref2 = reference_forward(x2, w1b, b1b, w2b, b2b)
    packed2 = pack_params(w1b, b1b, w2b, b2b, compute_dtype=jnp.float32)
    out2 = jax.block_until_ready(
        ml1_probe_forward(x2, *packed2, out_dim=out_dim, k_tile_override=128))
    assert out2.shape == (batch2, out_dim)
    assert jnp.allclose(out2, ref2, atol=1e-4, rtol=1e-4), "K-tiled path mismatch"

    print("KERNEL_OK")
</pallas_src>

<mosaic_0001>
module attributes {stable_mosaic.version = 11 : i64} {
  func.func @ml1_probe_kernel(%arg0: i32, %arg1: i32, %arg2: memref<8x32xf32, #tpu.memory_space<vmem>>, %arg3: memref<32x384xf32, #tpu.memory_space<vmem>>, %arg4: memref<1x384xf32, #tpu.memory_space<vmem>>, %arg5: memref<384x128xf32, #tpu.memory_space<vmem>>, %arg6: memref<1x128xf32, #tpu.memory_space<vmem>>, %arg7: memref<8x128xf32, #tpu.memory_space<vmem>>, %arg8: memref<8x384xf32, #tpu.memory_space<vmem>>) attributes {dimension_semantics = [#tpu.dimension_semantics<parallel>, #tpu.dimension_semantics<arbitrary>], iteration_bounds = array<i64: 2, 1>, scalar_prefetch = 0 : i64, scratch_operands = 1 : i64, tpu.core_type = #tpu.core_type<tc>, window_params = [{transform_indices = @transform_0, window_bounds = array<i64: 8, 32>}, {pipeline_mode = #tpu.pipeline_mode<synchronous>, transform_indices = @transform_1, window_bounds = array<i64: 32, 384>}, {pipeline_mode = #tpu.pipeline_mode<synchronous>, transform_indices = @transform_2, window_bounds = array<i64: 1, 384>}, {pipeline_mode = #tpu.pipeline_mode<synchronous>, transform_indices = @transform_3, window_bounds = array<i64: 384, 128>}, {pipeline_mode = #tpu.pipeline_mode<synchronous>, transform_indices = @transform_4, window_bounds = array<i64: 1, 128>}, {transform_indices = @transform_5, window_bounds = array<i64: 8, 128>}]} {
    %c0_i32 = arith.constant 0 : i32
    %0 = arith.cmpi eq, %arg1, %c0_i32 : i32
    %1 = arith.extui %0 : i1 to i32
    %c0_i32_0 = arith.constant 0 : i32
    %2 = arith.cmpi ne, %1, %c0_i32_0 : i32
    scf.if %2 {
      %cst_10 = arith.constant 0.000000e+00 : f32
      %12 = vector.broadcast %cst_10 : f32 to vector<8x384xf32>
      %c0_11 = arith.constant 0 : index
      %c0_12 = arith.constant 0 : index
      %13 = vector.load %arg8[%c0_11, %c0_12] : memref<8x384xf32, #tpu.memory_space<vmem>>, vector<8x384xf32>
      tpu.vector_store %arg8[%c0_11, %c0_12], %12 {strides = array<i32>} : memref<8x384xf32, #tpu.memory_space<vmem>>, vector<8x384xf32>,
    } else {
    }
    %c0 = arith.constant 0 : index
    %c0_1 = arith.constant 0 : index
    %3 = vector.load %arg8[%c0, %c0_1] : memref<8x384xf32, #tpu.memory_space<vmem>>, vector<8x384xf32>
    %c0_2 = arith.constant 0 : index
    %c0_3 = arith.constant 0 : index
    %4 = vector.load %arg2[%c0_2, %c0_3] : memref<8x32xf32, #tpu.memory_space<vmem>>, vector<8x32xf32>
    %c0_4 = arith.constant 0 : index
    %c0_5 = arith.constant 0 : index
    %5 = vector.load %arg3[%c0_4, %c0_5] : memref<32x384xf32, #tpu.memory_space<vmem>>, vector<32x384xf32>
    %cst = arith.constant dense<0.000000e+00> : vector<8x384xf32>
    %6 = tpu.matmul %4, %5, %cst {dimension_numbers = #tpu.dot_dimension_numbers<[1], [0], [0], [1], [0, 0, 1, 1], [], []>} : vector<8x32xf32>, vector<32x384xf32>, vector<8x384xf32> -> vector<8x384xf32>
    %7 = arith.addf %3, %6 : vector<8x384xf32>
    %c0_6 = arith.constant 0 : index
    %c0_7 = arith.constant 0 : index
    %8 = vector.load %arg8[%c0_6, %c0_7] : memref<8x384xf32, #tpu.memory_space<vmem>>, vector<8x384xf32>
    tpu.vector_store %arg8[%c0_6, %c0_7], %7 {strides = array<i32>} : memref<8x384xf32, #tpu.memory_space<vmem>>, vector<8x384xf32>,
    %c0_i32_8 = arith.constant 0 : i32
    %9 = arith.cmpi eq, %arg1, %c0_i32_8 : i32
    %10 = arith.extui %9 : i1 to i32
    %c0_i32_9 = arith.constant 0 : i32
    %11 = arith.cmpi ne, %10, %c0_i32_9 : i32
    scf.if %11 {
      %c0_10 = arith.constant 0 : index
      %c0_11 = arith.constant 0 : index
      %12 = vector.load %arg8[%c0_10, %c0_11] : memref<8x384xf32, #tpu.memory_space<vmem>>, vector<8x384xf32>
      %c0_12 = arith.constant 0 : index
      %c0_13 = arith.constant 0 : index
      %13 = vector.load %arg4[%c0_12, %c0_13] : memref<1x384xf32, #tpu.memory_space<vmem>>, vector<1x384xf32>
      %14 = vector.broadcast %13 : vector<1x384xf32> to vector<8x384xf32>
      %15 = arith.addf %12, %14 : vector<8x384xf32>
      %cst_14 = arith.constant 0.000000e+00 : f32
      %16 = vector.broadcast %cst_14 : f32 to vector<8x384xf32>
      %17 = arith.maximumf %15, %16 : vector<8x384xf32>
      %c0_15 = arith.constant 0 : index
      %c0_16 = arith.constant 0 : index
      %18 = vector.load %arg5[%c0_15, %c0_16] : memref<384x128xf32, #tpu.memory_space<vmem>>, vector<384x128xf32>
      %cst_17 = arith.constant dense<0.000000e+00> : vector<8x128xf32>
      %19 = tpu.matmul %17, %18, %cst_17 {dimension_numbers = #tpu.dot_dimension_numbers<[1], [0], [0], [1], [0, 0, 1, 1], [], []>} : vector<8x384xf32>, vector<384x128xf32>, vector<8x128xf32> -> vector<8x128xf32>
      %c0_18 = arith.constant 0 : index
      %c0_19 = arith.constant 0 : index
      %20 = vector.load %arg6[%c0_18, %c0_19] : memref<1x128xf32, #tpu.memory_space<vmem>>, vector<1x128xf32>
      %21 = vector.broadcast %20 : vector<1x128xf32> to vector<8x128xf32>
      %22 = arith.addf %19, %21 : vector<8x128xf32>
      %cst_20 = arith.constant dense<0xFF800000> : vector<8xf32>
      %23 = vector.multi_reduction <maximumf>, %22, %cst_20 [1] : vector<8x128xf32> to vector<8xf32>
      %24 = vector.shape_cast %23 : vector<8xf32> to vector<8x1xf32>
      %25 = vector.broadcast %24 : vector<8x1xf32> to vector<8x128xf32>
      %26 = arith.subf %22, %25 : vector<8x128xf32>
      %27 = math.exp %26 : vector<8x128xf32>
      %cst_21 = arith.constant dense<0.000000e+00> : vector<8xf32>
      %28 = vector.multi_reduction <add>, %27, %cst_21 [1] : vector<8x128xf32> to vector<8xf32>
      %29 = vector.shape_cast %28 : vector<8xf32> to vector<8x1xf32>
      %30 = tpu.reciprocal %29 : vector<8x1xf32> -> vector<8x1xf32>
      %31 = vector.broadcast %30 : vector<8x1xf32> to vector<8x128xf32>
      %32 = arith.mulf %27, %31 : vector<8x128xf32>
      %c0_22 = arith.constant 0 : index
      %c0_23 = arith.constant 0 : index
      %33 = vector.load %arg7[%c0_22, %c0_23] : memref<8x128xf32, #tpu.memory_space<vmem>>, vector<8x128xf32>
      tpu.vector_store %arg7[%c0_22, %c0_23], %32 {strides = array<i32>} : memref<8x128xf32, #tpu.memory_space<vmem>>, vector<8x128xf32>,
    } else {
    }
    return
  }
  func.func @transform_0(%arg0: i32, %arg1: i32) -> (i32, i32) {
    %c0_i32 = arith.constant 0 : i32
    return %arg0, %arg1 : i32, i32
  }
  func.func @transform_1(%arg0: i32, %arg1: i32) -> (i32, i32) {
    %c0_i32 = arith.constant 0 : i32
    %c0_i32_0 = arith.constant 0 : i32
    %c0_i32_1 = arith.constant 0 : i32
    return %c0_i32, %c0_i32_0 : i32, i32
  }
  func.func @transform_2(%arg0: i32, %arg1: i32) -> (i32, i32) {
    %c0_i32 = arith.constant 0 : i32
    %c0_i32_0 = arith.constant 0 : i32
    %c0_i32_1 = arith.constant 0 : i32
    return %c0_i32, %c0_i32_0 : i32, i32
  }
  func.func @transform_3(%arg0: i32, %arg1: i32) -> (i32, i32) {
    %c0_i32 = arith.constant 0 : i32
    %c0_i32_0 = arith.constant 0 : i32
    %c0_i32_1 = arith.constant 0 : i32
    return %c0_i32, %c0_i32_0 : i32, i32
  }
  func.func @transform_4(%arg0: i32, %arg1: i32) -> (i32, i32) {
    %c0_i32 = arith.constant 0 : i32
    %c0_i32_0 = arith.constant 0 : i32
    %c0_i32_1 = arith.constant 0 : i32
    return %c0_i32, %c0_i32_0 : i32, i32
  }
  func.func @transform_5(%arg0: i32, %arg1: i32) -> (i32, i32) {
    %c0_i32 = arith.constant 0 : i32
    %c0_i32_0 = arith.constant 0 : i32
    return %arg0, %c0_i32 : i32, i32
  }
}

module attributes {stable_mosaic.version = 11 : i64} {
  func.func @ml1_probe_kernel(%arg0: i32, %arg1: i32, %arg2: memref<8x32xf32, #tpu.memory_space<vmem>>, %arg3: memref<32x384xf32, #tpu.memory_space<vmem>>, %arg4: memref<1x384xf32, #tpu.memory_space<vmem>>, %arg5: memref<384x128xf32, #tpu.memory_space<vmem>>, %arg6: memref<1x128xf32, #tpu.memory_space<vmem>>, %arg7: memref<8x128xf32, #tpu.memory_space<vmem>>, %arg8: memref<8x384xf32, #tpu.memory_space<vmem>>) attributes {dimension_semantics = [#tpu.dimension_semantics<parallel>, #tpu.dimension_semantics<arbitrary>], iteration_bounds = array<i64: 2, 1>, scalar_prefetch = 0 : i64, scratch_operands = 1 : i64, tpu.core_type = #tpu.core_type<tc>, window_params = [{transform_indices = @transform_0, window_bounds = array<i64: 8, 32>}, {pipeline_mode = #tpu.pipeline_mode<synchronous>, transform_indices = @transform_1, window_bounds = array<i64: 32, 384>}, {pipeline_mode = #tpu.pipeline_mode<synchronous>, transform_indices = @transform_2, window_bounds = array<i64: 1, 384>}, {pipeline_mode = #tpu.pipeline_mode<synchronous>, transform_indices = @transform_3, window_bounds = array<i64: 384, 128>}, {pipeline_mode = #tpu.pipeline_mode<synchronous>, transform_indices = @transform_4, window_bounds = array<i64: 1, 128>}, {transform_indices = @transform_5, window_bounds = array<i64: 8, 128>}]} {
    %c0_i32 = arith.constant 0 : i32
    %0 = arith.cmpi eq, %arg1, %c0_i32 : i32
    %1 = arith.extui %0 : i1 to i32
    %c0_i32_0 = arith.constant 0 : i32
    %2 = arith.cmpi ne, %1, %c0_i32_0 : i32
    scf.if %2 {
      %cst_10 = arith.constant 0.000000e+00 : f32
      %12 = vector.broadcast %cst_10 : f32 to vector<8x384xf32>
      %c0_11 = arith.constant 0 : index
      %c0_12 = arith.constant 0 : index
      %13 = vector.load %arg8[%c0_11, %c0_12] : memref<8x384xf32, #tpu.memory_space<vmem>>, vector<8x384xf32>
      tpu.vector_store %arg8[%c0_11, %c0_12], %12 {strides = array<i32>} : memref<8x384xf32, #tpu.memory_space<vmem>>, vector<8x384xf32>,
    } else {
    }
    %c0 = arith.constant 0 : index
    %c0_1 = arith.constant 0 : index
    %3 = vector.load %arg8[%c0, %c0_1] : memref<8x384xf32, #tpu.memory_space<vmem>>, vector<8x384xf32>
    %c0_2 = arith.constant 0 : index
    %c0_3 = arith.constant 0 : index
    %4 = vector.load %arg2[%c0_2, %c0_3] : memref<8x32xf32, #tpu.memory_space<vmem>>, vector<8x32xf32>
    %c0_4 = arith.constant 0 : index
    %c0_5 = arith.constant 0 : index
    %5 = vector.load %arg3[%c0_4, %c0_5] : memref<32x384xf32, #tpu.memory_space<vmem>>, vector<32x384xf32>
    %cst = arith.constant dense<0.000000e+00> : vector<8x384xf32>
    %6 = tpu.matmul %4, %5, %cst {dimension_numbers = #tpu.dot_dimension_numbers<[1], [0], [0], [1], [0, 0, 1, 1], [], []>} : vector<8x32xf32>, vector<32x384xf32>, vector<8x384xf32> -> vector<8x384xf32>
    %7 = arith.addf %3, %6 : vector<8x384xf32>
    %c0_6 = arith.constant 0 : index
    %c0_7 = arith.constant 0 : index
    %8 = vector.load %arg8[%c0_6, %c0_7] : memref<8x384xf32, #tpu.memory_space<vmem>>, vector<8x384xf32>
    tpu.vector_store %arg8[%c0_6, %c0_7], %7 {strides = array<i32>} : memref<8x384xf32, #tpu.memory_space<vmem>>, vector<8x384xf32>,
    %c0_i32_8 = arith.constant 0 : i32
    %9 = arith.cmpi eq, %arg1, %c0_i32_8 : i32
    %10 = arith.extui %9 : i1 to i32
    %c0_i32_9 = arith.constant 0 : i32
    %11 = arith.cmpi ne, %10, %c0_i32_9 : i32
    scf.if %11 {
      %c0_10 = arith.constant 0 : index
      %c0_11 = arith.constant 0 : index
      %12 = vector.load %arg8[%c0_10, %c0_11] : memref<8x384xf32, #tpu.memory_space<vmem>>, vector<8x384xf32>
      %c0_12 = arith.constant 0 : index
      %c0_13 = arith.constant 0 : index
      %13 = vector.load %arg4[%c0_12, %c0_13] : memref<1x384xf32, #tpu.memory_space<vmem>>, vector<1x384xf32>
      %14 = vector.broadcast %13 : vector<1x384xf32> to vector<8x384xf32>
      %15 = arith.addf %12, %14 : vector<8x384xf32>
      %cst_14 = arith.constant 0.000000e+00 : f32
      %16 = vector.broadcast %cst_14 : f32 to vector<8x384xf32>
      %17 = arith.maximumf %15, %16 : vector<8x384xf32>
      %c0_15 = arith.constant 0 : index
      %c0_16 = arith.constant 0 : index
      %18 = vector.load %arg5[%c0_15, %c0_16] : memref<384x128xf32, #tpu.memory_space<vmem>>, vector<384x128xf32>
      %cst_17 = arith.constant dense<0.000000e+00> : vector<8x128xf32>
      %19 = tpu.matmul %17, %18, %cst_17 {dimension_numbers = #tpu.dot_dimension_numbers<[1], [0], [0], [1], [0, 0, 1, 1], [], []>} : vector<8x384xf32>, vector<384x128xf32>, vector<8x128xf32> -> vector<8x128xf32>
      %c0_18 = arith.constant 0 : index
      %c0_19 = arith.constant 0 : index
      %20 = vector.load %arg6[%c0_18, %c0_19] : memref<1x128xf32, #tpu.memory_space<vmem>>, vector<1x128xf32>
      %21 = vector.broadcast %20 : vector<1x128xf32> to vector<8x128xf32>
      %22 = arith.addf %19, %21 : vector<8x128xf32>
      %cst_20 = arith.constant dense<0xFF800000> : vector<8xf32>
      %23 = vector.multi_reduction <maximumf>, %22, %cst_20 [1] : vector<8x128xf32> to vector<8xf32>
      %24 = vector.shape_cast %23 : vector<8xf32> to vector<8x1xf32>
      %25 = vector.broadcast %24 : vector<8x1xf32> to vector<8x128xf32>
      %26 = arith.subf %22, %25 : vector<8x128xf32>
      %27 = math.exp %26 : vector<8x128xf32>
      %cst_21 = arith.constant dense<0.000000e+00> : vector<8xf32>
      %28 = vector.multi_reduction <add>, %27, %cst_21 [1] : vector<8x128xf32> to vector<8xf32>
      %29 = vector.shape_cast %28 : vector<8xf32> to vector<8x1xf32>
      %30 = tpu.reciprocal %29 : vector<8x1xf32> -> vector<8x1xf32>
      %31 = vector.broadcast %30 : vector<8x1xf32> to vector<8x128xf32>
      %32 = arith.mulf %27, %31 : vector<8x128xf32>
      %c0_22 = arith.constant 0 : index
      %c0_23 = arith.constant 0 : index
      %33 = vector.load %arg7[%c0_22, %c0_23] : memref<8x128xf32, #tpu.memory_space<vmem>>, vector<8x128xf32>
      tpu.vector_store %arg7[%c0_22, %c0_23], %32 {strides = array<i32>} : memref<8x128xf32, #tpu.memory_space<vmem>>, vector<8x128xf32>,
    } else {
    }
    return
  }
  func.func @transform_0(%arg0: i32, %arg1: i32) -> (i32, i32) {
    %c0_i32 = arith.constant 0 : i32
    return %arg0, %arg1 : i32, i32
  }
  func.func @transform_1(%arg0: i32, %arg1: i32) -> (i32, i32) {
    %c0_i32 = arith.constant 0 : i32
    %c0_i32_0 = arith.constant 0 : i32
    %c0_i32_1 = arith.constant 0 : i32
    return %c0_i32, %c0_i32_0 : i32, i32
  }
  func.func @transform_2(%arg0: i32, %arg1: i32) -> (i32, i32) {
    %c0_i32 = arith.constant 0 : i32
    %c0_i32_0 = arith.constant 0 : i32
    %c0_i32_1 = arith.constant 0 : i32
    return %c0_i32, %c0_i32_0 : i32, i32
  }
  func.func @transform_3(%arg0: i32, %arg1: i32) -> (i32, i32) {
    %c0_i32 = arith.constant 0 : i32
    %c0_i32_0 = arith.constant 0 : i32
    %c0_i32_1 = arith.constant 0 : i32
    return %c0_i32, %c0_i32_0 : i32, i32
  }
  func.func @transform_4(%arg0: i32, %arg1: i32) -> (i32, i32) {
    %c0_i32 = arith.constant 0 : i32
    %c0_i32_0 = arith.constant 0 : i32
    %c0_i32_1 = arith.constant 0 : i32
    return %c0_i32, %c0_i32_0 : i32, i32
  }
  func.func @transform_5(%arg0: i32, %arg1: i32) -> (i32, i32) {
    %c0_i32 = arith.constant 0 : i32
    %c0_i32_0 = arith.constant 0 : i32
    return %arg0, %c0_i32 : i32, i32
  }
}

</mosaic_0001>

<llo_original>
// kernel: _forward_impl.1
$region0: #{_forward_impl.1}
  #allocation0 [shape = 'u32[]', space=smem, size = 0x4, offset = 0x4, fixed_abs, tag = 'smem constant byte address 0x4 - core index']
  #allocation1 [shape = 'u32[72,128]{1,0:T(1,128)}', space=vmem, size = 0x9000, scoped, tag = 'internal scratch']
  #allocation2 [shape = 'f32[8,384]{1,0:T(8,128)}', space=vmem, size = 0x3000, scoped, tag = 'scratch operand']
  %s0 = inlined_call_operand.hbm [shape: f32[16,32], index: 0, kind: input, shape index: {}]
  %s1 = inlined_call_operand.hbm [shape: f32[32,384], index: 1, kind: input, shape index: {}]
  %s2 = inlined_call_operand.hbm [shape: f32[1,384], index: 2, kind: input, shape index: {}]
  %s3 = inlined_call_operand.hbm [shape: f32[384,128], index: 3, kind: input, shape index: {}]
  %s4 = inlined_call_operand.vmem [shape: f32[1,128], index: 4, kind: input, shape index: {}]
  %s5 = inlined_call_operand.hbm [shape: f32[16,128], index: 5, kind: output, shape index: {}]
  %s6 = sld [smem:[#allocation0]]
  $region77: #{_forward_impl.1} parent=0
    _
  %s8 = ssub.s32 1, %s6
  %s9 = scalar_select 0, %s8, %s6
  $region1: #{_forward_impl.1} parent=0
    #allocation3 [shape = 'u8[8192]{0}', space=vmem, size = 0x2000, scoped, tag = 'input window, operand 0']
    #allocation4 [shape = 's32[2]{0}', space=sflag, size = 0x8, scoped, tag = 'scoped memory for _forward_impl.1']
    #allocation5 [shape = 's32[2]{0}', space=sflag, size = 0x8, scoped, tag = 'scoped memory for _forward_impl.1']
    #allocation6 [shape = 'u8[49152]{0}', space=vmem, size = 0xc000, scoped, tag = 'input window, operand 1, single buffered']
    #allocation7 [shape = 's32[1]{0}', space=sflag, size = 0x4, scoped, tag = 'scoped memory for _forward_impl.1']
    #allocation8 [shape = 'u8[1536]{0}', space=vmem, size = 0x800, scoped, tag = 'input window, operand 2, single buffered']
    #allocation9 [shape = 'u8[196608]{0}', space=vmem, size = 0x30000, scoped, tag = 'input window, operand 3, single buffered']
    #allocation10 [shape = 's32[1]{0}', space=sflag, size = 0x4, scoped, tag = 'scoped memory for _forward_impl.1']
    #allocation11 [shape = 'u8[8192]{0}', space=vmem, size = 0x2000, scoped, tag = 'output window, operand 0']
    %10 = vsyncpa [#allocation4], 0
    %s11 = scalar_lea.sflag [#allocation4], 1
    %12 = vsyncpa %s11, 0
    %13 = vsyncpa [#allocation7], 0
    %14 = vsyncpa [#allocation10], 0
    %15 = vsyncpa [#allocation5], 0
    %s16 = scalar_lea.sflag [#allocation5], 1
    %17 = vsyncpa %s16, 0
    loop: start=0, step=1, limit=4
    $region2: #{_forward_impl.1} parent=1 // loop_pre_header
      _
    $region3: #{_forward_impl.1} parent=1 // loop_header
      %s19 = sphi 0, %s23
      %p20 = scmp.ge.s32.totalorder %s19, 4
      %s26 = sphi 0, %s38
      %s27 = sphi 0, %s34
      %s28 = sphi 0, %s26
      %s29 = sphi 0, %s27
      %s30 = sphi 0, %s28
      %s31 = sphi 0, %s29
      %s43 = sphi 0, %s45
      %s46 = sphi 0, %s43
      %s47 = sphi 0, %s46
      %s63 = sphi 0, %s47
      %s67 = sphi 0, %s67
      %s69 = sphi 0, %s67
      %s70 = sphi 0, %s69
      %s84 = sphi 0, %s70
      %s88 = sphi 0, %s88
      %s90 = sphi 0, %s88
      %s91 = sphi 0, %s90
      %s105 = sphi 0, %s91
      %s109 = sphi 0, %s109
      %s111 = sphi 0, %s109
      %s112 = sphi 0, %s111
      %s126 = sphi 0, %s112
      %s130 = sphi 0, %s130
      %s132 = sphi 0, %s130
      %s133 = sphi 0, %s132
      %s147 = sphi 0, %s133
      %s153 = sphi 0, %s155
      %s156 = sphi 0, %s153
      %s157 = sphi 0, %s156
      %s173 = sphi 0, %s157
    $region4: #{_forward_impl.1} parent=1 // loop_header_branch
      %22 = sbr.rel (%p20) target = $region8
    $region5: #{_forward_impl.1} parent=1 // loop_body
      %s24 = ssub.s32 %s19, 1
      %s25 = ssub.s32 %s19, 2
      %s32 = sadd.s32 1, %s27
      %p33 = scmp.ge.s32.totalorder %s32, 1
      %s34 = scalar_select %p33, 0, %s32
      %s35 = sadd.s32 1, %s26
      %s36 = scalar_select %p33, %s35, %s26
      %p37 = scmp.ge.s32.totalorder %s36, 2
      %s38 = scalar_select %p37, 0, %s36
      %s39 = ssub.s32 %s26, %s38
      %s40 = ssub.s32 %s27, %s34
      %s41 = sor.u32 %s39, %s40
      %p42 = scmp.eq.s32.totalorder %s41, 0
      %s44 = sadd.s32 %s43, 1
      %s45 = scalar_select %p42, %s43, %s44
      %p48 = pneg %p42
      %p49 = scmp.eq.s32.totalorder %s19, 1
      %p50 = por %p48, %p49
      %p51 = scmp.ne.s32.totalorder %s43, %s46
      %p52 = scmp.eq.s32.totalorder %s19, 0
      %p53 = por %p51, %p52
      %p54 = scmp.ne.s32.totalorder %s43, %s46
      %p55 = scmp.eq.s32.totalorder %s24, 1
      %p56 = por %p54, %p55
      %p57 = scmp.ne.s32.totalorder %s46, %s47
      %p58 = scmp.eq.s32.totalorder %s24, 0
      %p59 = por %p57, %p58
      %p60 = scmp.ne.s32.totalorder %s46, %s47
      %p61 = scmp.eq.s32.totalorder %s25, 1
      %p62 = por %p60, %p61
      %p64 = scmp.ne.s32.totalorder %s47, %s63
      %p65 = scmp.eq.s32.totalorder %s25, 0
      %p66 = por %p64, %p65
      %s68 = sadd.s32 %s67, 1
      %p71 = scmp.eq.s32.totalorder %s19, 1
      %p72 = scmp.ne.s32.totalorder %s67, %s69
      %p73 = scmp.eq.s32.totalorder %s19, 0
      %p74 = por %p72, %p73
      %p75 = scmp.ne.s32.totalorder %s67, %s69
      %p76 = scmp.eq.s32.totalorder %s24, 1
      %p77 = por %p75, %p76
      %p78 = scmp.ne.s32.totalorder %s69, %s70
      %p79 = scmp.eq.s32.totalorder %s24, 0
      %p80 = por %p78, %p79
      %p81 = scmp.ne.s32.totalorder %s69, %s70
      %p82 = scmp.eq.s32.totalorder %s25, 1
      %p83 = por %p81, %p82
      %p85 = scmp.ne.s32.totalorder %s70, %s84
      %p86 = scmp.eq.s32.totalorder %s25, 0
      %p87 = por %p85, %p86
      %s89 = sadd.s32 %s88, 1
      %p92 = scmp.eq.s32.totalorder %s19, 1
      %p93 = scmp.ne.s32.totalorder %s88, %s90
      %p94 = scmp.eq.s32.totalorder %s19, 0
      %p95 = por %p93, %p94
      %p96 = scmp.ne.s32.totalorder %s88, %s90
      %p97 = scmp.eq.s32.totalorder %s24, 1
      %p98 = por %p96, %p97
      %p99 = scmp.ne.s32.totalorder %s90, %s91
      %p100 = scmp.eq.s32.totalorder %s24, 0
      %p101 = por %p99, %p100
      %p102 = scmp.ne.s32.totalorder %s90, %s91
      %p103 = scmp.eq.s32.totalorder %s25, 1
      %p104 = por %p102, %p103
      %p106 = scmp.ne.s32.totalorder %s91, %s105
      %p107 = scmp.eq.s32.totalorder %s25, 0
      %p108 = por %p106, %p107
      %s110 = sadd.s32 %s109, 1
      %p113 = scmp.eq.s32.totalorder %s19, 1
      %p114 = scmp.ne.s32.totalorder %s109, %s111
      %p115 = scmp.eq.s32.totalorder %s19, 0
      %p116 = por %p114, %p115
      %p117 = scmp.ne.s32.totalorder %s109, %s111
      %p118 = scmp.eq.s32.totalorder %s24, 1
      %p119 = por %p117, %p118
      %p120 = scmp.ne.s32.totalorder %s111, %s112
      %p121 = scmp.eq.s32.totalorder %s24, 0
      %p122 = por %p120, %p121
      %p123 = scmp.ne.s32.totalorder %s111, %s112
      %p124 = scmp.eq.s32.totalorder %s25, 1
      %p125 = por %p123, %p124
      %p127 = scmp.ne.s32.totalorder %s112, %s126
      %p128 = scmp.eq.s32.totalorder %s25, 0
      %p129 = por %p127, %p128
      %s131 = sadd.s32 %s130, 1
      %p134 = scmp.eq.s32.totalorder %s19, 1
      %p135 = scmp.ne.s32.totalorder %s130, %s132
      %p136 = scmp.eq.s32.totalorder %s19, 0
      %p137 = por %p135, %p136
      %p138 = scmp.ne.s32.totalorder %s130, %s132
      %p139 = scmp.eq.s32.totalorder %s24, 1
      %p140 = por %p138, %p139
      %p141 = scmp.ne.s32.totalorder %s132, %s133
      %p142 = scmp.eq.s32.totalorder %s24, 0
      %p143 = por %p141, %p142
      %p144 = scmp.ne.s32.totalorder %s132, %s133
      %p145 = scmp.eq.s32.totalorder %s25, 1
      %p146 = por %p144, %p145
      %p148 = scmp.ne.s32.totalorder %s133, %s147
      %p149 = scmp.eq.s32.totalorder %s25, 0
      %p150 = por %p148, %p149
      %s151 = ssub.s32 %s26, %s38
      %p152 = scmp.eq.s32.totalorder %s151, 0
      %s154 = sadd.s32 %s153, 1
      %s155 = scalar_select %p152, %s153, %s154
      %p158 = pneg %p152
      %p159 = scmp.eq.s32.totalorder %s19, 1
      %p160 = por %p158, %p159
      %p161 = scmp.ne.s32.totalorder %s153, %s156
      %p162 = scmp.eq.s32.totalorder %s19, 0
      %p163 = por %p161, %p162
      %p164 = scmp.ne.s32.totalorder %s153, %s156
      %p165 = scmp.eq.s32.totalorder %s24, 1
      %p166 = por %p164, %p165
      %p167 = scmp.ne.s32.totalorder %s156, %s157
      %p168 = scmp.eq.s32.totalorder %s24, 0
      %p169 = por %p167, %p168
      %p170 = scmp.ne.s32.totalorder %s156, %s157
      %p171 = scmp.eq.s32.totalorder %s25, 1
      %p172 = por %p170, %p171
      %p174 = scmp.ne.s32.totalorder %s157, %s173
      %p175 = scmp.eq.s32.totalorder %s25, 0
      %p176 = por %p174, %p175
      %p177 = scmp.le.s32.totalorder 1, %s19
      %p178 = scmp.lt.s32.totalorder %s19, 3
      %p179 = pnand %p177, %p178
      %p180 = pneg %p179
      // Predicated region
      $region9: #{_forward_impl.1} parent=5 // pred_check
        _
      $region10: #{_forward_impl.1} parent=5 // pred_check_branch
        %182 = sbr.rel (%p179) target = $region12
      $region11: #{_forward_impl.1} parent=5 // pred_region
        %s183 = ssub.s32 %s19, 1
        // Predicated region
        $region13: #{_forward_impl.1} parent=11 // pred_check
          %p184 = pneg %p80
        $region14: #{_forward_impl.1} parent=11 // pred_check_branch
          %186 = sbr.rel (%p184) target = $region16
        $region15: #{_forward_impl.1} parent=11 // pred_region
          %188 = vsyncadd [#allocation7], 0
          %s189 = sshll.u32 %s1, 4
          %s190 = int_to_ptr.hbm [resolvable:$true] %s189
          %s191 = sshll.u32 [#allocation6], 4
          %s192 = int_to_ptr.vmem [resolvable:$true] %s191
          %197 = dma.hbm_to_vmem [thread:$0]  %s190, 1536, %s192, [#allocation7], 384, 384, 24
        $region16: #{_forward_impl.1} parent=11 // pred_fallthru
          _
        // Predicated region
        $region17: #{_forward_impl.1} parent=11 // pred_check
          %p198 = pneg %p101
        $region18: #{_forward_impl.1} parent=11 // pred_check_branch
          %200 = sbr.rel (%p198) target = $region20
        $region19: #{_forward_impl.1} parent=11 // pred_region
          %202 = vsyncadd [#allocation7], 0
          %s204 = sshll.u32 %s2, 4
          %s205 = int_to_ptr.hbm [resolvable:$true] %s204
          %s206 = sshll.u32 [#allocation8], 4
          %s207 = int_to_ptr.vmem [resolvable:$true] %s206
          %209 = dma.hbm_to_vmem [thread:$0]  %s205, 48, %s207, [#allocation7]
        $region20: #{_forward_impl.1} parent=11 // pred_fallthru
          _
        // Predicated region
        $region21: #{_forward_impl.1} parent=11 // pred_check
          %p210 = pneg %p122
        $region22: #{_forward_impl.1} parent=11 // pred_check_branch
          %212 = sbr.rel (%p210) target = $region24
        $region23: #{_forward_impl.1} parent=11 // pred_region
          %214 = vsyncadd [#allocation10], 0
          %s215 = sshll.u32 %s3, 4
          %s216 = int_to_ptr.hbm [resolvable:$true] %s215
          %s217 = sshll.u32 [#allocation9], 4
          %s218 = int_to_ptr.vmem [resolvable:$true] %s217
          %223 = dma.hbm_to_vmem [thread:$0]  %s216, 6144, %s218, [#allocation10], 128, 128, 8
        $region24: #{_forward_impl.1} parent=11 // pred_fallthru
          _
        // Predicated region
        $region25: #{_forward_impl.1} parent=11 // pred_check
          %p224 = pneg %p143
        $region26: #{_forward_impl.1} parent=11 // pred_check_branch
          %226 = sbr.rel (%p224) target = $region28
        $region27: #{_forward_impl.1} parent=11 // pred_region
          _
        $region28: #{_forward_impl.1} parent=11 // pred_fallthru
          _
      $region12: #{_forward_impl.1} parent=5 // pred_fallthru
        _
      %p227 = scmp.lt.s32.totalorder %s19, 2
      // Predicated region
      $region29: #{_forward_impl.1} parent=5 // pred_check
        %p228 = pneg %p227
      $region30: #{_forward_impl.1} parent=5 // pred_check_branch
        %230 = sbr.rel (%p228) target = $region32
      $region31: #{_forward_impl.1} parent=5 // pred_region
        // Predicated region
        $region33: #{_forward_impl.1} parent=31 // pred_check
          %p231 = pneg %p53
        $region34: #{_forward_impl.1} parent=31 // pred_check_branch
          %233 = sbr.rel (%p231) target = $region36
        $region35: #{_forward_impl.1} parent=31 // pred_region
          %s234 = sand.u32 %s43, 1
          %s235 = scalar_lea.sflag [#allocation4], %s234
          %s236 = sand.u32 %s43, 1
          %s237 = smul.addr %s236, 8
          %s238 = scalar_lea.vmem [#allocation3], %s237
          %240 = vsyncadd %s235, 0
          %s241 = sadd.s32 %s27, %s26
          %s242 = smul.addr %s241, 8
          %s243 = scalar_lea.hbm %s0, %s242
          %s245 = sshll.u32 %s243, 4
          %s246 = int_to_ptr.hbm [resolvable:$true] %s245
          %s247 = sshll.u32 %s238, 4
          %s248 = int_to_ptr.vmem [resolvable:$true] %s247
          %250 = dma.hbm_to_vmem [thread:$0]  %s246, 128, %s248, %s235
        $region36: #{_forward_impl.1} parent=31 // pred_fallthru
          _
      $region32: #{_forward_impl.1} parent=5 // pred_fallthru
        _
      %p251 = scmp.le.s32.totalorder 1, %s19
      %p252 = scmp.lt.s32.totalorder %s19, 3
      %p253 = pnand %p251, %p252
      %p254 = pneg %p253
      // Predicated region
      $region37: #{_forward_impl.1} parent=5 // pred_check
        _
      $region38: #{_forward_impl.1} parent=5 // pred_check_branch
        %256 = sbr.rel (%p253) target = $region40
      $region39: #{_forward_impl.1} parent=5 // pred_region
        %s257 = ssub.s32 %s19, 1
        %s258 = sand.u32 %s46, 1
        %s259 = scalar_lea.sflag [#allocation4], %s258
        %s260 = sand.u32 %s46, 1
        %s261 = smul.addr %s260, 8
        %s262 = scalar_lea.vmem [#allocation3], %s261
        // Predicated region
        $region41: #{_forward_impl.1} parent=39 // pred_check
          %p263 = pneg %p59
        $region42: #{_forward_impl.1} parent=39 // pred_check_branch
          %265 = sbr.rel (%p263) target = $region44
        $region43: #{_forward_impl.1} parent=39 // pred_region
          %267 = dma.done %s259, 128
        $region44: #{_forward_impl.1} parent=39 // pred_fallthru
          _
        // Predicated region
        $region45: #{_forward_impl.1} parent=39 // pred_check
          %p268 = pneg %p80
        $region46: #{_forward_impl.1} parent=39 // pred_check_branch
          %270 = sbr.rel (%p268) target = $region48
        $region47: #{_forward_impl.1} parent=39 // pred_region
          %272 = dma.done [#allocation7], 1536
        $region48: #{_forward_impl.1} parent=39 // pred_fallthru
          _
        // Predicated region
        $region49: #{_forward_impl.1} parent=39 // pred_check
          %p273 = pneg %p101
        $region50: #{_forward_impl.1} parent=39 // pred_check_branch
          %275 = sbr.rel (%p273) target = $region52
        $region51: #{_forward_impl.1} parent=39 // pred_region
          %277 = dma.done [#allocation7], 48
        $region52: #{_forward_impl.1} parent=39 // pred_fallthru
          _
        // Predicated region
        $region53: #{_forward_impl.1} parent=39 // pred_check
          %p278 = pneg %p122
        $region54: #{_forward_impl.1} parent=39 // pred_check_branch
          %280 = sbr.rel (%p278) target = $region56
        $region55: #{_forward_impl.1} parent=39 // pred_region
          %282 = dma.done [#allocation10], 6144
        $region56: #{_forward_impl.1} parent=39 // pred_fallthru
          _
        %s283 = sand.u32 %s46, 1
        %s284 = scalar_lea.sflag [#allocation4], %s283
        %s285 = sand.u32 %s46, 1
        %s286 = smul.addr %s285, 8
        %s287 = scalar_lea.vmem [#allocation3], %s286
        %p288 = pneg %p59
        %p289 = pneg %p56
        %p290 = pneg %p80
        %p291 = pneg %p77
        %p292 = pneg %p101
        %p293 = pneg %p98
        %p294 = pneg %p122
        %p295 = pneg %p119
        %p296 = pneg %p143
        %p297 = pneg %p140
        %p298 = pneg %p169
        %p299 = pneg %p166
        %s300 = sand.u32 %s156, 1
        %s301 = scalar_lea.sflag [#allocation5], %s300
        %s302 = sand.u32 %s156, 1
        %s303 = smul.addr %s302, 8
        %s304 = scalar_lea.vmem [#allocation11], %s303
        %p305 = scmp.eq.s32.totalorder %s29, 0
        // Predicated region
        $region57: #{_forward_impl.1} parent=39 // pred_check
          %p306 = pneg %p305
        $region58: #{_forward_impl.1} parent=39 // pred_check_branch
          %308 = sbr.rel (%p306) target = $region60
        $region59: #{_forward_impl.1} parent=39 // pred_region
          %309 = vst [vmem:[#allocation2] sm:$0xff] 0.0
          %310 = vst [vmem:[#allocation2 + $0x8] sm:$0xff] 0.0
          %311 = vst [vmem:[#allocation2 + $0x10] sm:$0xff] 0.0
        $region60: #{_forward_impl.1} parent=39 // pred_fallthru
          _
        %v312 = vld [vmem:[#allocation2] sm:$0xff]
        %v313 = vld [vmem:[#allocation2 + $0x8] sm:$0xff]
        %v314 = vld [vmem:[#allocation2 + $0x10] sm:$0xff]
        %v315 = vld [vmem:[%s262] sm:$0xff]
        %v316 = vld [vmem:[#allocation6] sm:$0xff]
        %v317 = vld [vmem:[#allocation6 + $0x8] sm:$0xff]
        %v318 = vld [vmem:[#allocation6 + $0x10] sm:$0xff]
        %v319 = vld [vmem:[#allocation6 + $0x18] sm:$0xff]
        %v320 = vld [vmem:[#allocation6 + $0x20] sm:$0xff]
        %v321 = vld [vmem:[#allocation6 + $0x28] sm:$0xff]
        %v322 = vld [vmem:[#allocation6 + $0x30] sm:$0xff]
        %v323 = vld [vmem:[#allocation6 + $0x38] sm:$0xff]
        %v324 = vld [vmem:[#allocation6 + $0x40] sm:$0xff]
        %v325 = vld [vmem:[#allocation6 + $0x48] sm:$0xff]
        %v326 = vld [vmem:[#allocation6 + $0x50] sm:$0xff]
        %v327 = vld [vmem:[#allocation6 + $0x58] sm:$0xff]
        %vm328 = vcmask 261120
        %v330 = vsel %vm328, %v315, 0
        %332 = vmatpush.msra.mxu0 0.0
        %333 = vmatpush.msra.mxu0 0.0
        %334 = vmatpush.msra.mxu0 0.0
        %335 = vmatpush.msra.mxu0 0.0
        %336 = vmatpush.msra.mxu0 0.0
        %337 = vmatpush.msra.mxu0 0.0
        %338 = vmatpush.msra.mxu0 0.0
        %339 = vmatpush.msra.mxu0 0.0
        %340 = vmatpush.msra.mxu0 0.0
        %341 = vmatpush.msra.mxu0 0.0
        %342 = vmatpush.msra.mxu0 0.0
        %343 = vmatpush.msra.mxu0 0.0
        %344 = vmatpush.msra.mxu0 %v325
        %345 = vmatpush.msra.mxu0 %v322
        %346 = vmatpush.msra.mxu0 %v319
        %347 = vmatpush.msra.mxu0 %v316
        %348 = vmatmul.f32.gmra.mxu0 %v330
        %v349 = vpop.f32.mrf.mxu0
        %v350 = vadd.f32 0.0, %v349
        %351 = vdwg.mxu0
        %352 = vmatpush.msra.mxu0 0.0
        %353 = vmatpush.msra.mxu0 0.0
        %354 = vmatpush.msra.mxu0 0.0
        %355 = vmatpush.msra.mxu0 0.0
        %356 = vmatpush.msra.mxu0 0.0
        %357 = vmatpush.msra.mxu0 0.0
        %358 = vmatpush.msra.mxu0 0.0
        %359 = vmatpush.msra.mxu0 0.0
        %360 = vmatpush.msra.mxu0 0.0
        %361 = vmatpush.msra.mxu0 0.0
        %362 = vmatpush.msra.mxu0 0.0
        %363 = vmatpush.msra.mxu0 0.0
        %364 = vmatpush.msra.mxu0 %v326
        %365 = vmatpush.msra.mxu0 %v323
        %366 = vmatpush.msra.mxu0 %v320
        %367 = vmatpush.msra.mxu0 %v317
        %368 = vmatmul.f32.gmra.mxu0 %v330
        %v369 = vpop.f32.mrf.mxu0
        %v370 = vadd.f32 0.0, %v369
        %371 = vdwg.mxu0
        %372 = vmatpush.msra.mxu0 0.0
        %373 = vmatpush.msra.mxu0 0.0
        %374 = vmatpush.msra.mxu0 0.0
        %375 = vmatpush.msra.mxu0 0.0
        %376 = vmatpush.msra.mxu0 0.0
        %377 = vmatpush.msra.mxu0 0.0
        %378 = vmatpush.msra.mxu0 0.0
        %379 = vmatpush.msra.mxu0 0.0
        %380 = vmatpush.msra.mxu0 0.0
        %381 = vmatpush.msra.mxu0 0.0
        %382 = vmatpush.msra.mxu0 0.0
        %383 = vmatpush.msra.mxu0 0.0
        %384 = vmatpush.msra.mxu0 %v327
        %385 = vmatpush.msra.mxu0 %v324
        %386 = vmatpush.msra.mxu0 %v321
        %387 = vmatpush.msra.mxu0 %v318
        %388 = vmatmul.f32.gmra.mxu0 %v330
        %v389 = vpop.f32.mrf.mxu0
        %v390 = vadd.f32 0.0, %v389
        %391 = vdwg.mxu0
        %v392 = vadd.f32 %v312, %v350
        %v393 = vadd.f32 %v313, %v370
        %v394 = vadd.f32 %v314, %v390
        %395 = vst [vmem:[#allocation2] sm:$0xff] %v392
        %396 = vst [vmem:[#allocation2 + $0x8] sm:$0xff] %v393
        %397 = vst [vmem:[#allocation2 + $0x10] sm:$0xff] %v394
        // Predicated region
        $region61: #{_forward_impl.1} parent=39 // pred_check
          %p398 = pneg %p305
        $region62: #{_forward_impl.1} parent=39 // pred_check_branch
          %400 = sbr.rel (%p398) target = $region64
        $region63: #{_forward_impl.1} parent=39 // pred_region
          %v401 = vld [vmem:[#allocation2] sm:$0xff]
          %v402 = vld [vmem:[#allocation2 + $0x8] sm:$0xff]
          %v403 = vld [vmem:[#allocation2 + $0x10] sm:$0xff]
          %v404 = vld [vmem:[#allocation8] sm:$0x7]
          %v406 = vperm.slane %v404, 0
          %v407 = vperm.slane %v404, 1
          %v408 = vperm.slane %v404, 2
          %v412 = vadd.f32 %v401, %v406
          %v413 = vadd.f32 %v402, %v407
          %v414 = vadd.f32 %v403, %v408
          %v415 = vmax.f32 %v412, 0.0
          %v416 = vmax.f32 %v413, 0.0
          %v417 = vmax.f32 %v414, 0.0
          %v418 = vld [vmem:[#allocation9] sm:$0xff]
          %v419 = vld [vmem:[#allocation9 + $0x8] sm:$0xff]
          %v420 = vld [vmem:[#allocation9 + $0x10] sm:$0xff]
          %v421 = vld [vmem:[#allocation9 + $0x18] sm:$0xff]
          %v422 = vld [vmem:[#allocation9 + $0x20] sm:$0xff]
          %v423 = vld [vmem:[#allocation9 + $0x28] sm:$0xff]
          %v424 = vld [vmem:[#allocation9 + $0x30] sm:$0xff]
          %v425 = vld [vmem:[#allocation9 + $0x38] sm:$0xff]
          %v426 = vld [vmem:[#allocation9 + $0x40] sm:$0xff]
          %v427 = vld [vmem:[#allocation9 + $0x48] sm:$0xff]
          %v428 = vld [vmem:[#allocation9 + $0x50] sm:$0xff]
          %v429 = vld [vmem:[#allocation9 + $0x58] sm:$0xff]
          %v430 = vld [vmem:[#allocation9 + $0x60] sm:$0xff]
          %v431 = vld [vmem:[#allocation9 + $0x68] sm:$0xff]
          %v432 = vld [vmem:[#allocation9 + $0x70] sm:$0xff]
          %v433 = vld [vmem:[#allocation9 + $0x78] sm:$0xff]
          %v434 = vld [vmem:[#allocation9 + $0x80] sm:$0xff]
          %v435 = vld [vmem:[#allocation9 + $0x88] sm:$0xff]
          %v436 = vld [vmem:[#allocation9 + $0x90] sm:$0xff]
          %v437 = vld [vmem:[#allocation9 + $0x98] sm:$0xff]
          %v438 = vld [vmem:[#allocation9 + $0xa0] sm:$0xff]
          %v439 = vld [vmem:[#allocation9 + $0xa8] sm:$0xff]
          %v440 = vld [vmem:[#allocation9 + $0xb0] sm:$0xff]
          %v441 = vld [vmem:[#allocation9 + $0xb8] sm:$0xff]
          %v442 = vld [vmem:[#allocation9 + $0xc0] sm:$0xff]
          %v443 = vld [vmem:[#allocation9 + $0xc8] sm:$0xff]
          %v444 = vld [vmem:[#allocation9 + $0xd0] sm:$0xff]
          %v445 = vld [vmem:[#allocation9 + $0xd8] sm:$0xff]
          %v446 = vld [vmem:[#allocation9 + $0xe0] sm:$0xff]
          %v447 = vld [vmem:[#allocation9 + $0xe8] sm:$0xff]
          %v448 = vld [vmem:[#allocation9 + $0xf0] sm:$0xff]
          %v449 = vld [vmem:[#allocation9 + $0xf8] sm:$0xff]
          %v450 = vld [vmem:[#allocation9 + $0x100] sm:$0xff]
          %v451 = vld [vmem:[#allocation9 + $0x108] sm:$0xff]
          %v452 = vld [vmem:[#allocation9 + $0x110] sm:$0xff]
          %v453 = vld [vmem:[#allocation9 + $0x118] sm:$0xff]
          %v454 = vld [vmem:[#allocation9 + $0x120] sm:$0xff]
          %v455 = vld [vmem:[#allocation9 + $0x128] sm:$0xff]
          %v456 = vld [vmem:[#allocation9 + $0x130] sm:$0xff]
          %v457 = vld [vmem:[#allocation9 + $0x138] sm:$0xff]
          %v458 = vld [vmem:[#allocation9 + $0x140] sm:$0xff]
          %v459 = vld [vmem:[#allocation9 + $0x148] sm:$0xff]
          %v460 = vld [vmem:[#allocation9 + $0x150] sm:$0xff]
          %v461 = vld [vmem:[#allocation9 + $0x158] sm:$0xff]
          %v462 = vld [vmem:[#allocation9 + $0x160] sm:$0xff]
          %v463 = vld [vmem:[#allocation9 + $0x168] sm:$0xff]
          %v464 = vld [vmem:[#allocation9 + $0x170] sm:$0xff]
          %v465 = vld [vmem:[#allocation9 + $0x178] sm:$0xff]
          %v466 = vld [vmem:[%s4] sm:$0x1]
          %v468 = vperm.slane %v466, 0
          %470 = vmatpush.msra.mxu0 %v433
          %471 = vmatpush.msra.mxu0 %v432
          %472 = vmatpush.msra.mxu0 %v431
          %473 = vmatpush.msra.mxu0 %v430
          %474 = vmatpush.msra.mxu0 %v429
          %475 = vmatpush.msra.mxu0 %v428
          %476 = vmatpush.msra.mxu0 %v427
          %477 = vmatpush.msra.mxu0 %v426
          %478 = vmatpush.msra.mxu0 %v425
          %479 = vmatpush.msra.mxu0 %v424
          %480 = vmatpush.msra.mxu0 %v423
          %481 = vmatpush.msra.mxu0 %v422
          %482 = vmatpush.msra.mxu0 %v421
          %483 = vmatpush.msra.mxu0 %v420
          %484 = vmatpush.msra.mxu0 %v419
          %485 = vmatpush.msra.mxu0 %v418
          %486 = vmatmul.f32.gmra.mxu0 %v415
          %v487 = vpop.f32.mrf.mxu0
          %v488 = vadd.f32 %v468, %v487
          %489 = vdwg.mxu0
          %490 = vmatpush.msra.mxu0 %v449
          %491 = vmatpush.msra.mxu0 %v448
          %492 = vmatpush.msra.mxu0 %v447
          %493 = vmatpush.msra.mxu0 %v446
          %494 = vmatpush.msra.mxu0 %v445
          %495 = vmatpush.msra.mxu0 %v444
          %496 = vmatpush.msra.mxu0 %v443
          %497 = vmatpush.msra.mxu0 %v442
          %498 = vmatpush.msra.mxu0 %v441
          %499 = vmatpush.msra.mxu0 %v440
          %500 = vmatpush.msra.mxu0 %v439
          %501 = vmatpush.msra.mxu0 %v438
          %502 = vmatpush.msra.mxu0 %v437
          %503 = vmatpush.msra.mxu0 %v436
          %504 = vmatpush.msra.mxu0 %v435
          %505 = vmatpush.msra.mxu0 %v434
          %506 = vmatmul.f32.gmra.mxu0 %v416
          %v507 = vpop.f32.mrf.mxu0
          %v508 = vadd.f32 %v488, %v507
          %509 = vdwg.mxu0
          %510 = vmatpush.msra.mxu0 %v465
          %511 = vmatpush.msra.mxu0 %v464
          %512 = vmatpush.msra.mxu0 %v463
          %513 = vmatpush.msra.mxu0 %v462
          %514 = vmatpush.msra.mxu0 %v461
          %515 = vmatpush.msra.mxu0 %v460
          %516 = vmatpush.msra.mxu0 %v459
          %517 = vmatpush.msra.mxu0 %v458
          %518 = vmatpush.msra.mxu0 %v457
          %519 = vmatpush.msra.mxu0 %v456
          %520 = vmatpush.msra.mxu0 %v455
          %521 = vmatpush.msra.mxu0 %v454
          %522 = vmatpush.msra.mxu0 %v453
          %523 = vmatpush.msra.mxu0 %v452
          %524 = vmatpush.msra.mxu0 %v451
          %525 = vmatpush.msra.mxu0 %v450
          %526 = vmatmul.f32.gmra.mxu0 %v417
          %v527 = vpop.f32.mrf.mxu0
          %v528 = vadd.f32 %v508, %v527
          %529 = vdwg.mxu0
          %530 = vmax.xlane.f32.xlu0 %v528
          %v531 = vpop.xlane.xlu0 %530
          %v532 = vsub.f32 %v528, %v531
          %v533 = vmul.f32 %v532, 1.442695
          %v534 = vpow.pop %v533
          %535 = vadd.xlane.f32.xlu0 %v534
          %v536 = vpop.xlane.xlu0 %535
          %v537 = vrcp.pop %v536
          %v538 = vmul.f32 %v536, %v537
          %v539 = vsub.f32 1.0, %v538
          %v540 = vmul.f32 %v537, %v539
          %v541 = vadd.f32 %v537, %v540
          %vm542 = vweird.f32 %v536
          %vm543 = vweird.f32 %v537
          %vm544 = vmor %vm542, %vm543
          %v545 = vsel %vm544, %v537, %v541
          %v546 = vand.u32 2147483647, %v536
          %vm547 = vcmp.eq.f32.partialorder %v546, 8.507059e+37
          %v548 = vand.u32 %v536, 2147483648
          %v549 = vor.u32 1.1754944e-38, %v548
          %v550 = vsel %vm547, %v549, %v545
          %v551 = vmul.f32 %v534, %v550
          %552 = vst [vmem:[%s304] sm:$0xff] %v551
        $region64: #{_forward_impl.1} parent=39 // pred_fallthru
          _
        %s553 = sand.u32 %s156, 1
        %s554 = scalar_lea.sflag [#allocation5], %s553
        %s555 = sand.u32 %s156, 1
        %s556 = smul.addr %s555, 8
        %s557 = scalar_lea.vmem [#allocation11], %s556
        // Predicated region
        $region65: #{_forward_impl.1} parent=39 // pred_check
          %p558 = pneg %p166
        $region66: #{_forward_impl.1} parent=39 // pred_check_branch
          %560 = sbr.rel (%p558) target = $region68
        $region67: #{_forward_impl.1} parent=39 // pred_region
          %562 = vsyncadd %s554, 0
          %s563 = smul.addr %s28, 8
          %s564 = scalar_lea.hbm %s5, %s563
          %s566 = sshll.u32 %s557, 4
          %s567 = int_to_ptr.vmem [resolvable:$true] %s566
          %s568 = sshll.u32 %s564, 4
          %s569 = int_to_ptr.hbm [resolvable:$true] %s568
          %571 = dma.vmem_to_hbm [thread:$0]  %s567, 128, %s569, %s554
        $region68: #{_forward_impl.1} parent=39 // pred_fallthru
          _
      $region40: #{_forward_impl.1} parent=5 // pred_fallthru
        _
      %p572 = scmp.le.s32.totalorder 2, %s19
      // Predicated region
      $region69: #{_forward_impl.1} parent=5 // pred_check
        %p573 = pneg %p572
      $region70: #{_forward_impl.1} parent=5 // pred_check_branch
        %575 = sbr.rel (%p573) target = $region72
      $region71: #{_forward_impl.1} parent=5 // pred_region
        %s576 = ssub.s32 %s19, 2
        // Predicated region
        $region73: #{_forward_impl.1} parent=71 // pred_check
          %p577 = pneg %p172
        $region74: #{_forward_impl.1} parent=71 // pred_check_branch
          %579 = sbr.rel (%p577) target = $region76
        $region75: #{_forward_impl.1} parent=71 // pred_region
          %s580 = sand.u32 %s157, 1
          %s581 = scalar_lea.sflag [#allocation5], %s580
          %s582 = sand.u32 %s157, 1
          %s583 = smul.addr %s582, 8
          %s584 = scalar_lea.vmem [#allocation11], %s583
          %586 = dma.done %s581, 128
        $region76: #{_forward_impl.1} parent=71 // pred_fallthru
          _
      $region72: #{_forward_impl.1} parent=5 // pred_fallthru
        _
    $region6: #{_forward_impl.1} parent=1 // loop_footer
      %s23 = sadd.s32 1, %s19
    $region7: #{_forward_impl.1} parent=1 // loop_footer_branch
      %18 = sbr.rel target = $region3
    $region8: #{_forward_impl.1} parent=1 // loop_exit
      _
    %587 = vsyncpa [#allocation4], 1
    %s588 = scalar_lea.sflag [#allocation4], 1
    %589 = vsyncpa %s588, 1
    %590 = vsyncpa [#allocation7], 1
    %591 = vsyncpa [#allocation10], 1
    %592 = vsyncpa [#allocation5], 1
    %s593 = scalar_lea.sflag [#allocation5], 1
    %594 = vsyncpa %s593, 1

// kernel: _forward_impl.1
$region0: #{_forward_impl.1}
  #allocation0 [shape = 'u32[]', space=smem, size = 0x4, offset = 0x4, fixed_abs, tag = 'smem constant byte address 0x4 - core index']
  #allocation1 [shape = 'u32[72,128]{1,0:T(1,128)}', space=vmem, size = 0x9000, scoped, tag = 'internal scratch']
  #allocation2 [shape = 'f32[8,384]{1,0:T(8,128)}', space=vmem, size = 0x3000, scoped, tag = 'scratch operand']
  %s0 = inlined_call_operand.hbm [shape: f32[16,32], index: 0, kind: input, shape index: {}]
  %s1 = inlined_call_operand.hbm [shape: f32[32,384], index: 1, kind: input, shape index: {}]
  %s2 = inlined_call_operand.hbm [shape: f32[1,384], index: 2, kind: input, shape index: {}]
  %s3 = inlined_call_operand.hbm [shape: f32[384,128], index: 3, kind: input, shape index: {}]
  %s4 = inlined_call_operand.vmem [shape: f32[1,128], index: 4, kind: input, shape index: {}]
  %s5 = inlined_call_operand.hbm [shape: f32[16,128], index: 5, kind: output, shape index: {}]
  %s6 = sld [smem:[#allocation0]]
  $region77: #{_forward_impl.1} parent=0
    _
  %s8 = ssub.s32 1, %s6
  %s9 = scalar_select 0, %s8, %s6
  $region1: #{_forward_impl.1} parent=0
    #allocation3 [shape = 'u8[8192]{0}', space=vmem, size = 0x2000, scoped, tag = 'input window, operand 0']
    #allocation4 [shape = 's32[2]{0}', space=sflag, size = 0x8, scoped, tag = 'scoped memory for _forward_impl.1']
    #allocation5 [shape = 's32[2]{0}', space=sflag, size = 0x8, scoped, tag = 'scoped memory for _forward_impl.1']
    #allocation6 [shape = 'u8[49152]{0}', space=vmem, size = 0xc000, scoped, tag = 'input window, operand 1, single buffered']
    #allocation7 [shape = 's32[1]{0}', space=sflag, size = 0x4, scoped, tag = 'scoped memory for _forward_impl.1']
    #allocation8 [shape = 'u8[1536]{0}', space=vmem, size = 0x800, scoped, tag = 'input window, operand 2, single buffered']
    #allocation9 [shape = 'u8[196608]{0}', space=vmem, size = 0x30000, scoped, tag = 'input window, operand 3, single buffered']
    #allocation10 [shape = 's32[1]{0}', space=sflag, size = 0x4, scoped, tag = 'scoped memory for _forward_impl.1']
    #allocation11 [shape = 'u8[8192]{0}', space=vmem, size = 0x2000, scoped, tag = 'output window, operand 0']
    %10 = vsyncpa [#allocation4], 0
    %s11 = scalar_lea.sflag [#allocation4], 1
    %12 = vsyncpa %s11, 0
    %13 = vsyncpa [#allocation7], 0
    %14 = vsyncpa [#allocation10], 0
    %15 = vsyncpa [#allocation5], 0
    %s16 = scalar_lea.sflag [#allocation5], 1
    %17 = vsyncpa %s16, 0
    loop: start=0, step=1, limit=4
    $region2: #{_forward_impl.1} parent=1 // loop_pre_header
      _
    $region3: #{_forward_impl.1} parent=1 // loop_header
      %s19 = sphi 0, %s23
      %p20 = scmp.ge.s32.totalorder %s19, 4
      %s26 = sphi 0, %s38
      %s27 = sphi 0, %s34
      %s28 = sphi 0, %s26
      %s29 = sphi 0, %s27
      %s30 = sphi 0, %s28
      %s31 = sphi 0, %s29
      %s43 = sphi 0, %s45
      %s46 = sphi 0, %s43
      %s47 = sphi 0, %s46
      %s63 = sphi 0, %s47
      %s67 = sphi 0, %s67
      %s69 = sphi 0, %s67
      %s70 = sphi 0, %s69
      %s84 = sphi 0, %s70
      %s88 = sphi 0, %s88
      %s90 = sphi 0, %s88
      %s91 = sphi 0, %s90
      %s105 = sphi 0, %s91
      %s109 = sphi 0, %s109
      %s111 = sphi 0, %s109
      %s112 = sphi 0, %s111
      %s126 = sphi 0, %s112
      %s130 = sphi 0, %s130
      %s132 = sphi 0, %s130
      %s133 = sphi 0, %s132
      %s147 = sphi 0, %s133
      %s153 = sphi 0, %s155
      %s156 = sphi 0, %s153
      %s157 = sphi 0, %s156
      %s173 = sphi 0, %s157
    $region4: #{_forward_impl.1} parent=1 // loop_header_branch
      %22 = sbr.rel (%p20) target = $region8
    $region5: #{_forward_impl.1} parent=1 // loop_body
      %s24 = ssub.s32 %s19, 1
      %s25 = ssub.s32 %s19, 2
      %s32 = sadd.s32 1, %s27
      %p33 = scmp.ge.s32.totalorder %s32, 1
      %s34 = scalar_select %p33, 0, %s32
      %s35 = sadd.s32 1, %s26
      %s36 = scalar_select %p33, %s35, %s26
      %p37 = scmp.ge.s32.totalorder %s36, 2
      %s38 = scalar_select %p37, 0, %s36
      %s39 = ssub.s32 %s26, %s38
      %s40 = ssub.s32 %s27, %s34
      %s41 = sor.u32 %s39, %s40
      %p42 = scmp.eq.s32.totalorder %s41, 0
      %s44 = sadd.s32 %s43, 1
      %s45 = scalar_select %p42, %s43, %s44
      %p48 = pneg %p42
      %p49 = scmp.eq.s32.totalorder %s19, 1
      %p50 = por %p48, %p49
      %p51 = scmp.ne.s32.totalorder %s43, %s46
      %p52 = scmp.eq.s32.totalorder %s19, 0
      %p53 = por %p51, %p52
      %p54 = scmp.ne.s32.totalorder %s43, %s46
      %p55 = scmp.eq.s32.totalorder %s24, 1
      %p56 = por %p54, %p55
      %p57 = scmp.ne.s32.totalorder %s46, %s47
      %p58 = scmp.eq.s32.totalorder %s24, 0
      %p59 = por %p57, %p58
      %p60 = scmp.ne.s32.totalorder %s46, %s47
      %p61 = scmp.eq.s32.totalorder %s25, 1
      %p62 = por %p60, %p61
      %p64 = scmp.ne.s32.totalorder %s47, %s63
      %p65 = scmp.eq.s32.totalorder %s25, 0
      %p66 = por %p64, %p65
      %s68 = sadd.s32 %s67, 1
      %p71 = scmp.eq.s32.totalorder %s19, 1
      %p72 = scmp.ne.s32.totalorder %s67, %s69
      %p73 = scmp.eq.s32.totalorder %s19, 0
      %p74 = por %p72, %p73
      %p75 = scmp.ne.s32.totalorder %s67, %s69
      %p76 = scmp.eq.s32.totalorder %s24, 1
      %p77 = por %p75, %p76
      %p78 = scmp.ne.s32.totalorder %s69, %s70
      %p79 = scmp.eq.s32.totalorder %s24, 0
      %p80 = por %p78, %p79
      %p81 = scmp.ne.s32.totalorder %s69, %s70
      %p82 = scmp.eq.s32.totalorder %s25, 1
      %p83 = por %p81, %p82
      %p85 = scmp.ne.s32.totalorder %s70, %s84
      %p86 = scmp.eq.s32.totalorder %s25, 0
      %p87 = por %p85, %p86
      %s89 = sadd.s32 %s88, 1
      %p92 = scmp.eq.s32.totalorder %s19, 1
      %p93 = scmp.ne.s32.totalorder %s88, %s90
      %p94 = scmp.eq.s32.totalorder %s19, 0
      %p95 = por %p93, %p94
      %p96 = scmp.ne.s32.totalorder %s88, %s90
      %p97 = scmp.eq.s32.totalorder %s24, 1
      %p98 = por %p96, %p97
      %p99 = scmp.ne.s32.totalorder %s90, %s91
      %p100 = scmp.eq.s32.totalorder %s24, 0
      %p101 = por %p99, %p100
      %p102 = scmp.ne.s32.totalorder %s90, %s91
      %p103 = scmp.eq.s32.totalorder %s25, 1
      %p104 = por %p102, %p103
      %p106 = scmp.ne.s32.totalorder %s91, %s105
      %p107 = scmp.eq.s32.totalorder %s25, 0
      %p108 = por %p106, %p107
      %s110 = sadd.s32 %s109, 1
      %p113 = scmp.eq.s32.totalorder %s19, 1
      %p114 = scmp.ne.s32.totalorder %s109, %s111
      %p115 = scmp.eq.s32.totalorder %s19, 0
      %p116 = por %p114, %p115
      %p117 = scmp.ne.s32.totalorder %s109, %s111
      %p118 = scmp.eq.s32.totalorder %s24, 1
      %p119 = por %p117, %p118
      %p120 = scmp.ne.s32.totalorder %s111, %s112
      %p121 = scmp.eq.s32.totalorder %s24, 0
      %p122 = por %p120, %p121
      %p123 = scmp.ne.s32.totalorder %s111, %s112
      %p124 = scmp.eq.s32.totalorder %s25, 1
      %p125 = por %p123, %p124
      %p127 = scmp.ne.s32.totalorder %s112, %s126
      %p128 = scmp.eq.s32.totalorder %s25, 0
      %p129 = por %p127, %p128
      %s131 = sadd.s32 %s130, 1
      %p134 = scmp.eq.s32.totalorder %s19, 1
      %p135 = scmp.ne.s32.totalorder %s130, %s132
      %p136 = scmp.eq.s32.totalorder %s19, 0
      %p137 = por %p135, %p136
      %p138 = scmp.ne.s32.totalorder %s130, %s132
      %p139 = scmp.eq.s32.totalorder %s24, 1
      %p140 = por %p138, %p139
      %p141 = scmp.ne.s32.totalorder %s132, %s133
      %p142 = scmp.eq.s32.totalorder %s24, 0
      %p143 = por %p141, %p142
      %p144 = scmp.ne.s32.totalorder %s132, %s133
      %p145 = scmp.eq.s32.totalorder %s25, 1
      %p146 = por %p144, %p145
      %p148 = scmp.ne.s32.totalorder %s133, %s147
      %p149 = scmp.eq.s32.totalorder %s25, 0
      %p150 = por %p148, %p149
      %s151 = ssub.s32 %s26, %s38
      %p152 = scmp.eq.s32.totalorder %s151, 0
      %s154 = sadd.s32 %s153, 1
      %s155 = scalar_select %p152, %s153, %s154
      %p158 = pneg %p152
      %p159 = scmp.eq.s32.totalorder %s19, 1
      %p160 = por %p158, %p159
      %p161 = scmp.ne.s32.totalorder %s153, %s156
      %p162 = scmp.eq.s32.totalorder %s19, 0
      %p163 = por %p161, %p162
      %p164 = scmp.ne.s32.totalorder %s153, %s156
      %p165 = scmp.eq.s32.totalorder %s24, 1
      %p166 = por %p164, %p165
      %p167 = scmp.ne.s32.totalorder %s156, %s157
      %p168 = scmp.eq.s32.totalorder %s24, 0
      %p169 = por %p167, %p168
      %p170 = scmp.ne.s32.totalorder %s156, %s157
      %p171 = scmp.eq.s32.totalorder %s25, 1
      %p172 = por %p170, %p171
      %p174 = scmp.ne.s32.totalorder %s157, %s173
      %p175 = scmp.eq.s32.totalorder %s25, 0
      %p176 = por %p174, %p175
      %p177 = scmp.le.s32.totalorder 1, %s19
      %p178 = scmp.lt.s32.totalorder %s19, 3
      %p179 = pnand %p177, %p178
      %p180 = pneg %p179
      // Predicated region
      $region9: #{_forward_impl.1} parent=5 // pred_check
        _
      $region10: #{_forward_impl.1} parent=5 // pred_check_branch
        %182 = sbr.rel (%p179) target = $region12
      $region11: #{_forward_impl.1} parent=5 // pred_region
        %s183 = ssub.s32 %s19, 1
        // Predicated region
        $region13: #{_forward_impl.1} parent=11 // pred_check
          %p184 = pneg %p80
        $region14: #{_forward_impl.1} parent=11 // pred_check_branch
          %186 = sbr.rel (%p184) target = $region16
        $region15: #{_forward_impl.1} parent=11 // pred_region
          %188 = vsyncadd [#allocation7], 0
          %s189 = sshll.u32 %s1, 4
          %s190 = int_to_ptr.hbm [resolvable:$true] %s189
          %s191 = sshll.u32 [#allocation6], 4
          %s192 = int_to_ptr.vmem [resolvable:$true] %s191
          %197 = dma.hbm_to_vmem [thread:$0]  %s190, 1536, %s192, [#allocation7], 384, 384, 24
        $region16: #{_forward_impl.1} parent=11 // pred_fallthru
          _
        // Predicated region
        $region17: #{_forward_impl.1} parent=11 // pred_check
          %p198 = pneg %p101
        $region18: #{_forward_impl.1} parent=11 // pred_check_branch
          %200 = sbr.rel (%p198) target = $region20
        $region19: #{_forward_impl.1} parent=11 // pred_region
          %202 = vsyncadd [#allocation7], 0
          %s204 = sshll.u32 %s2, 4
          %s205 = int_to_ptr.hbm [resolvable:$true] %s204
          %s206 = sshll.u32 [#allocation8], 4
          %s207 = int_to_ptr.vmem [resolvable:$true] %s206
          %209 = dma.hbm_to_vmem [thread:$0]  %s205, 48, %s207, [#allocation7]
        $region20: #{_forward_impl.1} parent=11 // pred_fallthru
          _
        // Predicated region
        $region21: #{_forward_impl.1} parent=11 // pred_check
          %p210 = pneg %p122
        $region22: #{_forward_impl.1} parent=11 // pred_check_branch
          %212 = sbr.rel (%p210) target = $region24
        $region23: #{_forward_impl.1} parent=11 // pred_region
          %214 = vsyncadd [#allocation10], 0
          %s215 = sshll.u32 %s3, 4
          %s216 = int_to_ptr.hbm [resolvable:$true] %s215
          %s217 = sshll.u32 [#allocation9], 4
          %s218 = int_to_ptr.vmem [resolvable:$true] %s217
          %223 = dma.hbm_to_vmem [thread:$0]  %s216, 6144, %s218, [#allocation10], 128, 128, 8
        $region24: #{_forward_impl.1} parent=11 // pred_fallthru
          _
        // Predicated region
        $region25: #{_forward_impl.1} parent=11 // pred_check
          %p224 = pneg %p143
        $region26: #{_forward_impl.1} parent=11 // pred_check_branch
          %226 = sbr.rel (%p224) target = $region28
        $region27: #{_forward_impl.1} parent=11 // pred_region
          _
        $region28: #{_forward_impl.1} parent=11 // pred_fallthru
          _
      $region12: #{_forward_impl.1} parent=5 // pred_fallthru
        _
      %p227 = scmp.lt.s32.totalorder %s19, 2
      // Predicated region
      $region29: #{_forward_impl.1} parent=5 // pred_check
        %p228 = pneg %p227
      $region30: #{_forward_impl.1} parent=5 // pred_check_branch
        %230 = sbr.rel (%p228) target = $region32
      $region31: #{_forward_impl.1} parent=5 // pred_region
        // Predicated region
        $region33: #{_forward_impl.1} parent=31 // pred_check
          %p231 = pneg %p53
        $region34: #{_forward_impl.1} parent=31 // pred_check_branch
          %233 = sbr.rel (%p231) target = $region36
        $region35: #{_forward_impl.1} parent=31 // pred_region
          %s234 = sand.u32 %s43, 1
          %s235 = scalar_lea.sflag [#allocation4], %s234
          %s236 = sand.u32 %s43, 1
          %s237 = smul.addr %s236, 8
          %s238 = scalar_lea.vmem [#allocation3], %s237
          %240 = vsyncadd %s235, 0
          %s241 = sadd.s32 %s27, %s26
          %s242 = smul.addr %s241, 8
          %s243 = scalar_lea.hbm %s0, %s242
          %s245 = sshll.u32 %s243, 4
          %s246 = int_to_ptr.hbm [resolvable:$true] %s245
          %s247 = sshll.u32 %s238, 4
          %s248 = int_to_ptr.vmem [resolvable:$true] %s247
          %250 = dma.hbm_to_vmem [thread:$0]  %s246, 128, %s248, %s235
        $region36: #{_forward_impl.1} parent=31 // pred_fallthru
          _
      $region32: #{_forward_impl.1} parent=5 // pred_fallthru
        _
      %p251 = scmp.le.s32.totalorder 1, %s19
      %p252 = scmp.lt.s32.totalorder %s19, 3
      %p253 = pnand %p251, %p252
      %p254 = pneg %p253
      // Predicated region
      $region37: #{_forward_impl.1} parent=5 // pred_check
        _
      $region38: #{_forward_impl.1} parent=5 // pred_check_branch
        %256 = sbr.rel (%p253) target = $region40
      $region39: #{_forward_impl.1} parent=5 // pred_region
        %s257 = ssub.s32 %s19, 1
        %s258 = sand.u32 %s46, 1
        %s259 = scalar_lea.sflag [#allocation4], %s258
        %s260 = sand.u32 %s46, 1
        %s261 = smul.addr %s260, 8
        %s262 = scalar_lea.vmem [#allocation3], %s261
        // Predicated region
        $region41: #{_forward_impl.1} parent=39 // pred_check
          %p263 = pneg %p59
        $region42: #{_forward_impl.1} parent=39 // pred_check_branch
          %265 = sbr.rel (%p263) target = $region44
        $region43: #{_forward_impl.1} parent=39 // pred_region
          %267 = dma.done %s259, 128
        $region44: #{_forward_impl.1} parent=39 // pred_fallthru
          _
        // Predicated region
        $region45: #{_forward_impl.1} parent=39 // pred_check
          %p268 = pneg %p80
        $region46: #{_forward_impl.1} parent=39 // pred_check_branch
          %270 = sbr.rel (%p268) target = $region48
        $region47: #{_forward_impl.1} parent=39 // pred_region
          %272 = dma.done [#allocation7], 1536
        $region48: #{_forward_impl.1} parent=39 // pred_fallthru
          _
        // Predicated region
        $region49: #{_forward_impl.1} parent=39 // pred_check
          %p273 = pneg %p101
        $region50: #{_forward_impl.1} parent=39 // pred_check_branch
          %275 = sbr.rel (%p273) target = $region52
        $region51: #{_forward_impl.1} parent=39 // pred_region
          %277 = dma.done [#allocation7], 48
        $region52: #{_forward_impl.1} parent=39 // pred_fallthru
          _
        // Predicated region
        $region53: #{_forward_impl.1} parent=39 // pred_check
          %p278 = pneg %p122
        $region54: #{_forward_impl.1} parent=39 // pred_check_branch
          %280 = sbr.rel (%p278) target = $region56
        $region55: #{_forward_impl.1} parent=39 // pred_region
          %282 = dma.done [#allocation10], 6144
        $region56: #{_forward_impl.1} parent=39 // pred_fallthru
          _
        %s283 = sand.u32 %s46, 1
        %s284 = scalar_lea.sflag [#allocation4], %s283
        %s285 = sand.u32 %s46, 1
        %s286 = smul.addr %s285, 8
        %s287 = scalar_lea.vmem [#allocation3], %s286
        %p288 = pneg %p59
        %p289 = pneg %p56
        %p290 = pneg %p80
        %p291 = pneg %p77
        %p292 = pneg %p101
        %p293 = pneg %p98
        %p294 = pneg %p122
        %p295 = pneg %p119
        %p296 = pneg %p143
        %p297 = pneg %p140
        %p298 = pneg %p169
        %p299 = pneg %p166
        %s300 = sand.u32 %s156, 1
        %s301 = scalar_lea.sflag [#allocation5], %s300
        %s302 = sand.u32 %s156, 1
        %s303 = smul.addr %s302, 8
        %s304 = scalar_lea.vmem [#allocation11], %s303
        %p305 = scmp.eq.s32.totalorder %s29, 0
        // Predicated region
        $region57: #{_forward_impl.1} parent=39 // pred_check
          %p306 = pneg %p305
        $region58: #{_forward_impl.1} parent=39 // pred_check_branch
          %308 = sbr.rel (%p306) target = $region60
        $region59: #{_forward_impl.1} parent=39 // pred_region
          %309 = vst [vmem:[#allocation2] sm:$0xff] 0.0
          %310 = vst [vmem:[#allocation2 + $0x8] sm:$0xff] 0.0
          %311 = vst [vmem:[#allocation2 + $0x10] sm:$0xff] 0.0
        $region60: #{_forward_impl.1} parent=39 // pred_fallthru
          _
        %v312 = vld [vmem:[#allocation2] sm:$0xff]
        %v313 = vld [vmem:[#allocation2 + $0x8] sm:$0xff]
        %v314 = vld [vmem:[#allocation2 + $0x10] sm:$0xff]
        %v315 = vld [vmem:[%s262] sm:$0xff]
        %v316 = vld [vmem:[#allocation6] sm:$0xff]
        %v317 = vld [vmem:[#allocation6 + $0x8] sm:$0xff]
        %v318 = vld [vmem:[#allocation6 + $0x10] sm:$0xff]
        %v319 = vld [vmem:[#allocation6 + $0x18] sm:$0xff]
        %v320 = vld [vmem:[#allocation6 + $0x20] sm:$0xff]
        %v321 = vld [vmem:[#allocation6 + $0x28] sm:$0xff]
        %v322 = vld [vmem:[#allocation6 + $0x30] sm:$0xff]
        %v323 = vld [vmem:[#allocation6 + $0x38] sm:$0xff]
        %v324 = vld [vmem:[#allocation6 + $0x40] sm:$0xff]
        %v325 = vld [vmem:[#allocation6 + $0x48] sm:$0xff]
        %v326 = vld [vmem:[#allocation6 + $0x50] sm:$0xff]
        %v327 = vld [vmem:[#allocation6 + $0x58] sm:$0xff]
        %vm328 = vcmask 261120
        %v330 = vsel %vm328, %v315, 0
        %332 = vmatpush.msra.mxu0 0.0
        %333 = vmatpush.msra.mxu0 0.0
        %334 = vmatpush.msra.mxu0 0.0
        %335 = vmatpush.msra.mxu0 0.0
        %336 = vmatpush.msra.mxu0 0.0
        %337 = vmatpush.msra.mxu0 0.0
        %338 = vmatpush.msra.mxu0 0.0
        %339 = vmatpush.msra.mxu0 0.0
        %340 = vmatpush.msra.mxu0 0.0
        %341 = vmatpush.msra.mxu0 0.0
        %342 = vmatpush.msra.mxu0 0.0
        %343 = vmatpush.msra.mxu0 0.0
        %344 = vmatpush.msra.mxu0 %v325
        %345 = vmatpush.msra.mxu0 %v322
        %346 = vmatpush.msra.mxu0 %v319
        %347 = vmatpush.msra.mxu0 %v316
        %348 = vmatmul.f32.gmra.mxu0 %v330
        %v349 = vpop.f32.mrf.mxu0
        %v350 = vadd.f32 0.0, %v349
        %351 = vdwg.mxu0
        %352 = vmatpush.msra.mxu0 0.0
        %353 = vmatpush.msra.mxu0 0.0
        %354 = vmatpush.msra.mxu0 0.0
        %355 = vmatpush.msra.mxu0 0.0
        %356 = vmatpush.msra.mxu0 0.0
        %357 = vmatpush.msra.mxu0 0.0
        %358 = vmatpush.msra.mxu0 0.0
        %359 = vmatpush.msra.mxu0 0.0
        %360 = vmatpush.msra.mxu0 0.0
        %361 = vmatpush.msra.mxu0 0.0
        %362 = vmatpush.msra.mxu0 0.0
        %363 = vmatpush.msra.mxu0 0.0
        %364 = vmatpush.msra.mxu0 %v326
        %365 = vmatpush.msra.mxu0 %v323
        %366 = vmatpush.msra.mxu0 %v320
        %367 = vmatpush.msra.mxu0 %v317
        %368 = vmatmul.f32.gmra.mxu0 %v330
        %v369 = vpop.f32.mrf.mxu0
        %v370 = vadd.f32 0.0, %v369
        %371 = vdwg.mxu0
        %372 = vmatpush.msra.mxu0 0.0
        %373 = vmatpush.msra.mxu0 0.0
        %374 = vmatpush.msra.mxu0 0.0
        %375 = vmatpush.msra.mxu0 0.0
        %376 = vmatpush.msra.mxu0 0.0
        %377 = vmatpush.msra.mxu0 0.0
        %378 = vmatpush.msra.mxu0 0.0
        %379 = vmatpush.msra.mxu0 0.0
        %380 = vmatpush.msra.mxu0 0.0
        %381 = vmatpush.msra.mxu0 0.0
        %382 = vmatpush.msra.mxu0 0.0
        %383 = vmatpush.msra.mxu0 0.0
        %384 = vmatpush.msra.mxu0 %v327
        %385 = vmatpush.msra.mxu0 %v324
        %386 = vmatpush.msra.mxu0 %v321
        %387 = vmatpush.msra.mxu0 %v318
        %388 = vmatmul.f32.gmra.mxu0 %v330
        %v389 = vpop.f32.mrf.mxu0
        %v390 = vadd.f32 0.0, %v389
        %391 = vdwg.mxu0
        %v392 = vadd.f32 %v312, %v350
        %v393 = vadd.f32 %v313, %v370
        %v394 = vadd.f32 %v314, %v390
        %395 = vst [vmem:[#allocation2] sm:$0xff] %v392
        %396 = vst [vmem:[#allocation2 + $0x8] sm:$0xff] %v393
        %397 = vst [vmem:[#allocation2 + $0x10] sm:$0xff] %v394
        // Predicated region
        $region61: #{_forward_impl.1} parent=39 // pred_check
          %p398 = pneg %p305
        $region62: #{_forward_impl.1} parent=39 // pred_check_branch
          %400 = sbr.rel (%p398) target = $region64
        $region63: #{_forward_impl.1} parent=39 // pred_region
          %v401 = vld [vmem:[#allocation2] sm:$0xff]
          %v402 = vld [vmem:[#allocation2 + $0x8] sm:$0xff]
          %v403 = vld [vmem:[#allocation2 + $0x10] sm:$0xff]
          %v404 = vld [vmem:[#allocation8] sm:$0x7]
          %v406 = vperm.slane %v404, 0
          %v407 = vperm.slane %v404, 1
          %v408 = vperm.slane %v404, 2
          %v412 = vadd.f32 %v401, %v406
          %v413 = vadd.f32 %v402, %v407
          %v414 = vadd.f32 %v403, %v408
          %v415 = vmax.f32 %v412, 0.0
          %v416 = vmax.f32 %v413, 0.0
          %v417 = vmax.f32 %v414, 0.0
          %v418 = vld [vmem:[#allocation9] sm:$0xff]
          %v419 = vld [vmem:[#allocation9 + $0x8] sm:$0xff]
          %v420 = vld [vmem:[#allocation9 + $0x10] sm:$0xff]
          %v421 = vld [vmem:[#allocation9 + $0x18] sm:$0xff]
          %v422 = vld [vmem:[#allocation9 + $0x20] sm:$0xff]
          %v423 = vld [vmem:[#allocation9 + $0x28] sm:$0xff]
          %v424 = vld [vmem:[#allocation9 + $0x30] sm:$0xff]
          %v425 = vld [vmem:[#allocation9 + $0x38] sm:$0xff]
          %v426 = vld [vmem:[#allocation9 + $0x40] sm:$0xff]
          %v427 = vld [vmem:[#allocation9 + $0x48] sm:$0xff]
          %v428 = vld [vmem:[#allocation9 + $0x50] sm:$0xff]
          %v429 = vld [vmem:[#allocation9 + $0x58] sm:$0xff]
          %v430 = vld [vmem:[#allocation9 + $0x60] sm:$0xff]
          %v431 = vld [vmem:[#allocation9 + $0x68] sm:$0xff]
          %v432 = vld [vmem:[#allocation9 + $0x70] sm:$0xff]
          %v433 = vld [vmem:[#allocation9 + $0x78] sm:$0xff]
          %v434 = vld [vmem:[#allocation9 + $0x80] sm:$0xff]
          %v435 = vld [vmem:[#allocation9 + $0x88] sm:$0xff]
          %v436 = vld [vmem:[#allocation9 + $0x90] sm:$0xff]
          %v437 = vld [vmem:[#allocation9 + $0x98] sm:$0xff]
          %v438 = vld [vmem:[#allocation9 + $0xa0] sm:$0xff]
          %v439 = vld [vmem:[#allocation9 + $0xa8] sm:$0xff]
          %v440 = vld [vmem:[#allocation9 + $0xb0] sm:$0xff]
          %v441 = vld [vmem:[#allocation9 + $0xb8] sm:$0xff]
          %v442 = vld [vmem:[#allocation9 + $0xc0] sm:$0xff]
          %v443 = vld [vmem:[#allocation9 + $0xc8] sm:$0xff]
          %v444 = vld [vmem:[#allocation9 + $0xd0] sm:$0xff]
          %v445 = vld [vmem:[#allocation9 + $0xd8] sm:$0xff]
          %v446 = vld [vmem:[#allocation9 + $0xe0] sm:$0xff]
          %v447 = vld [vmem:[#allocation9 + $0xe8] sm:$0xff]
          %v448 = vld [vmem:[#allocation9 + $0xf0] sm:$0xff]
          %v449 = vld [vmem:[#allocation9 + $0xf8] sm:$0xff]
          %v450 = vld [vmem:[#allocation9 + $0x100] sm:$0xff]
          %v451 = vld [vmem:[#allocation9 + $0x108] sm:$0xff]
          %v452 = vld [vmem:[#allocation9 + $0x110] sm:$0xff]
          %v453 = vld [vmem:[#allocation9 + $0x118] sm:$0xff]
          %v454 = vld [vmem:[#allocation9 + $0x120] sm:$0xff]
          %v455 = vld [vmem:[#allocation9 + $0x128] sm:$0xff]
          %v456 = vld [vmem:[#allocation9 + $0x130] sm:$0xff]
          %v457 = vld [vmem:[#allocation9 + $0x138] sm:$0xff]
          %v458 = vld [vmem:[#allocation9 + $0x140] sm:$0xff]
          %v459 = vld [vmem:[#allocation9 + $0x148] sm:$0xff]
          %v460 = vld [vmem:[#allocation9 + $0x150] sm:$0xff]
          %v461 = vld [vmem:[#allocation9 + $0x158] sm:$0xff]
          %v462 = vld [vmem:[#allocation9 + $0x160] sm:$0xff]
          %v463 = vld [vmem:[#allocation9 + $0x168] sm:$0xff]
          %v464 = vld [vmem:[#allocation9 + $0x170] sm:$0xff]
          %v465 = vld [vmem:[#allocation9 + $0x178] sm:$0xff]
          %v466 = vld [vmem:[%s4] sm:$0x1]
          %v468 = vperm.slane %v466, 0
          %470 = vmatpush.msra.mxu0 %v433
          %471 = vmatpush.msra.mxu0 %v432
          %472 = vmatpush.msra.mxu0 %v431
          %473 = vmatpush.msra.mxu0 %v430
          %474 = vmatpush.msra.mxu0 %v429
          %475 = vmatpush.msra.mxu0 %v428
          %476 = vmatpush.msra.mxu0 %v427
          %477 = vmatpush.msra.mxu0 %v426
          %478 = vmatpush.msra.mxu0 %v425
          %479 = vmatpush.msra.mxu0 %v424
          %480 = vmatpush.msra.mxu0 %v423
          %481 = vmatpush.msra.mxu0 %v422
          %482 = vmatpush.msra.mxu0 %v421
          %483 = vmatpush.msra.mxu0 %v420
          %484 = vmatpush.msra.mxu0 %v419
          %485 = vmatpush.msra.mxu0 %v418
          %486 = vmatmul.f32.gmra.mxu0 %v415
          %v487 = vpop.f32.mrf.mxu0
          %v488 = vadd.f32 %v468, %v487
          %489 = vdwg.mxu0
          %490 = vmatpush.msra.mxu0 %v449
          %491 = vmatpush.msra.mxu0 %v448
          %492 = vmatpush.msra.mxu0 %v447
          %493 = vmatpush.msra.mxu0 %v446
          %494 = vmatpush.msra.mxu0 %v445
          %495 = vmatpush.msra.mxu0 %v444
          %496 = vmatpush.msra.mxu0 %v443
          %497 = vmatpush.msra.mxu0 %v442
          %498 = vmatpush.msra.mxu0 %v441
          %499 = vmatpush.msra.mxu0 %v440
          %500 = vmatpush.msra.mxu0 %v439
          %501 = vmatpush.msra.mxu0 %v438
          %502 = vmatpush.msra.mxu0 %v437
          %503 = vmatpush.msra.mxu0 %v436
          %504 = vmatpush.msra.mxu0 %v435
          %505 = vmatpush.msra.mxu0 %v434
          %506 = vmatmul.f32.gmra.mxu0 %v416
          %v507 = vpop.f32.mrf.mxu0
          %v508 = vadd.f32 %v488, %v507
          %509 = vdwg.mxu0
          %510 = vmatpush.msra.mxu0 %v465
          %511 = vmatpush.msra.mxu0 %v464
          %512 = vmatpush.msra.mxu0 %v463
          %513 = vmatpush.msra.mxu0 %v462
          %514 = vmatpush.msra.mxu0 %v461
          %515 = vmatpush.msra.mxu0 %v460
          %516 = vmatpush.msra.mxu0 %v459
          %517 = vmatpush.msra.mxu0 %v458
          %518 = vmatpush.msra.mxu0 %v457
          %519 = vmatpush.msra.mxu0 %v456
          %520 = vmatpush.msra.mxu0 %v455
          %521 = vmatpush.msra.mxu0 %v454
          %522 = vmatpush.msra.mxu0 %v453
          %523 = vmatpush.msra.mxu0 %v452
          %524 = vmatpush.msra.mxu0 %v451
          %525 = vmatpush.msra.mxu0 %v450
          %526 = vmatmul.f32.gmra.mxu0 %v417
          %v527 = vpop.f32.mrf.mxu0
          %v528 = vadd.f32 %v508, %v527
          %529 = vdwg.mxu0
          %530 = vmax.xlane.f32.xlu0 %v528
          %v531 = vpop.xlane.xlu0 %530
          %v532 = vsub.f32 %v528, %v531
          %v533 = vmul.f32 %v532, 1.442695
          %v534 = vpow.pop %v533
          %535 = vadd.xlane.f32.xlu0 %v534
          %v536 = vpop.xlane.xlu0 %535
          %v537 = vrcp.pop %v536
          %v538 = vmul.f32 %v536, %v537
          %v539 = vsub.f32 1.0, %v538
          %v540 = vmul.f32 %v537, %v539
          %v541 = vadd.f32 %v537, %v540
          %vm542 = vweird.f32 %v536
          %vm543 = vweird.f32 %v537
          %vm544 = vmor %vm542, %vm543
          %v545 = vsel %vm544, %v537, %v541
          %v546 = vand.u32 2147483647, %v536
          %vm547 = vcmp.eq.f32.partialorder %v546, 8.507059e+37
          %v548 = vand.u32 %v536, 2147483648
          %v549 = vor.u32 1.1754944e-38, %v548
          %v550 = vsel %vm547, %v549, %v545
          %v551 = vmul.f32 %v534, %v550
          %552 = vst [vmem:[%s304] sm:$0xff] %v551
        $region64: #{_forward_impl.1} parent=39 // pred_fallthru
          _
        %s553 = sand.u32 %s156, 1
        %s554 = scalar_lea.sflag [#allocation5], %s553
        %s555 = sand.u32 %s156, 1
        %s556 = smul.addr %s555, 8
        %s557 = scalar_lea.vmem [#allocation11], %s556
        // Predicated region
        $region65: #{_forward_impl.1} parent=39 // pred_check
          %p558 = pneg %p166
        $region66: #{_forward_impl.1} parent=39 // pred_check_branch
          %560 = sbr.rel (%p558) target = $region68
        $region67: #{_forward_impl.1} parent=39 // pred_region
          %562 = vsyncadd %s554, 0
          %s563 = smul.addr %s28, 8
          %s564 = scalar_lea.hbm %s5, %s563
          %s566 = sshll.u32 %s557, 4
          %s567 = int_to_ptr.vmem [resolvable:$true] %s566
          %s568 = sshll.u32 %s564, 4
          %s569 = int_to_ptr.hbm [resolvable:$true] %s568
          %571 = dma.vmem_to_hbm [thread:$0]  %s567, 128, %s569, %s554
        $region68: #{_forward_impl.1} parent=39 // pred_fallthru
          _
      $region40: #{_forward_impl.1} parent=5 // pred_fallthru
        _
      %p572 = scmp.le.s32.totalorder 2, %s19
      // Predicated region
      $region69: #{_forward_impl.1} parent=5 // pred_check
        %p573 = pneg %p572
      $region70: #{_forward_impl.1} parent=5 // pred_check_branch
        %575 = sbr.rel (%p573) target = $region72
      $region71: #{_forward_impl.1} parent=5 // pred_region
        %s576 = ssub.s32 %s19, 2
        // Predicated region
        $region73: #{_forward_impl.1} parent=71 // pred_check
          %p577 = pneg %p172
        $region74: #{_forward_impl.1} parent=71 // pred_check_branch
          %579 = sbr.rel (%p577) target = $region76
        $region75: #{_forward_impl.1} parent=71 // pred_region
          %s580 = sand.u32 %s157, 1
          %s581 = scalar_lea.sflag [#allocation5], %s580
          %s582 = sand.u32 %s157, 1
          %s583 = smul.addr %s582, 8
          %s584 = scalar_lea.vmem [#allocation11], %s583
          %586 = dma.done %s581, 128
        $region76: #{_forward_impl.1} parent=71 // pred_fallthru
          _
      $region72: #{_forward_impl.1} parent=5 // pred_fallthru
        _
    $region6: #{_forward_impl.1} parent=1 // loop_footer
      %s23 = sadd.s32 1, %s19
    $region7: #{_forward_impl.1} parent=1 // loop_footer_branch
      %18 = sbr.rel target = $region3
    $region8: #{_forward_impl.1} parent=1 // loop_exit
      _
    %587 = vsyncpa [#allocation4], 1
    %s588 = scalar_lea.sflag [#allocation4], 1
    %589 = vsyncpa %s588, 1
    %590 = vsyncpa [#allocation7], 1
    %591 = vsyncpa [#allocation10], 1
    %592 = vsyncpa [#allocation5], 1
    %s593 = scalar_lea.sflag [#allocation5], 1
    %594 = vsyncpa %s593, 1

</llo_original>
